<compile_context>
chip_gen: v7x
topology: tpu7x:2x2x1
jax: 0.10.0
libtpu: 0.0.40
codegen_flags: <defaults>
</compile_context>

<pallas_src>
import functools

import jax
import jax.numpy as jnp
from jax import lax
from jax.experimental import pallas as pl
from jax.experimental.pallas import tpu as pltpu


# ----------------------------------------------------------------------------
# Pallas kernel: fused ConvBlock  (3x3 conv + BN + ReLU + 1x1 conv)
# ----------------------------------------------------------------------------
def _convblock_kernel(x_ref, w1_ref, sb_ref, w2_ref, b2_ref, o_ref, xbuf_ref,
                      *, img_w, pad):
    # x_ref   : (1, Cin, H*W)        bf16  flattened NCHW image (Cin on sublanes,
    #                                       all H*W pixels on the lane axis)
    # w1_ref  : (9, Cmid, Cin)       bf16  3x3 conv weights, tap-major
    # sb_ref  : (Cmid, 2)            f32   col0 = folded BN scale, col1 = bias
    # w2_ref  : (1, Cmid)            f32   1x1 conv weights
    # b2_ref  : (1,)                 f32   1x1 conv bias (SMEM scalar)
    # o_ref   : (1, 1, H*W)          f32   lane-dense output row
    # xbuf_ref: (Cin, pad+H*W+pad)   bf16  scratch; image at lane offset `pad`
    Cin = x_ref.shape[1]
    HW = x_ref.shape[2]
    Cmid = w1_ref.shape[1]
    W = img_w

    # Interior: lane-aligned copy of the image (fully overwritten every step).
    xbuf_ref[:, pad:pad + HW] = x_ref[0]
    # Zero ONLY the two W-wide halo strips read by the +/-1-row taps (not the
    # whole buffer).  Per-step (not pl.when(step==0)) => megacore-safe.
    xbuf_ref[:, pad - W:pad] = jnp.zeros((Cin, W), jnp.bfloat16)
    xbuf_ref[:, pad + HW:pad + HW + W] = jnp.zeros((Cin, W), jnp.bfloat16)

    # Column-validity masks for the dx = -1 / +1 taps: outputs in image column
    # 0 / W-1 must not read across a row boundary of the flattened image.
    col = lax.broadcasted_iota(jnp.int32, (1, HW), 1) % W
    not_first_col = col != 0
    not_last_col = col != (W - 1)

    # 3x3 conv as nine (Cmid, Cin) @ (Cin, H*W) bf16 MXU matmuls, f32 accum.
    acc = jnp.zeros((Cmid, HW), jnp.float32)
    tap = 0
    for dy in (-1, 0, 1):
        for dx in (-1, 0, 1):
            start = pad + dy * W + dx                       # static per tap
            sl = xbuf_ref[:, start:start + HW]              # (Cin, H*W) bf16
            if dx == -1:
                sl = jnp.where(not_first_col, sl, jnp.zeros_like(sl))
            elif dx == 1:
                sl = jnp.where(not_last_col, sl, jnp.zeros_like(sl))
            acc = acc + jnp.dot(w1_ref[tap], sl,
                                preferred_element_type=jnp.float32)
            tap += 1

    # Folded BatchNorm + ReLU (per-Cmid scale/bias broadcast along lanes).
    scale = sb_ref[:, 0:1]
    bias = sb_ref[:, 1:2]
    h = jnp.maximum(acc * scale + bias, 0.0)                # (Cmid, H*W) f32

    # 1x1 conv: (1, Cmid) @ (Cmid, H*W) -> lane-dense (1, H*W), no transpose.
    out = jnp.dot(w2_ref[...], h, preferred_element_type=jnp.float32)
    o_ref[...] = (out + b2_ref[0]).reshape(1, 1, HW)


def _pick_vmem_limit(requested_bytes):
    """Generation-aware VMEM limit: footprint-driven, capped at ~75% physical."""
    want = max(32 * 1024 * 1024, int(requested_bytes))
    try:
        phys = pltpu.get_tpu_info().vmem_capacity_bytes
        cap = (phys * 3) // 4          # ~96 MiB on v5e/v6e, ~48 MiB on v7x
    except Exception:                   # pragma: no cover - older JAX / interpret
        cap = 48 * 1024 * 1024
    return min(want, cap)


def convblock_pallas(x_nchw, params):
    """ConvBlock forward.  x_nchw: (B, Cin, H, W) float32 -> (B, 1, H, W)."""
    w1, b1, gamma, beta, mean, var, w2, b2 = params
    B, Cin, H, W = x_nchw.shape
    Cmid = w1.shape[0]
    HW = H * W
    eps = 1e-5

    # Fold BatchNorm (eval mode) and the conv1 bias into one scale/bias pair,
    # laid out as (Cmid, 2) so it broadcasts per-sublane inside the kernel.
    bn_scale = gamma / jnp.sqrt(var + eps)
    bn_bias = b1 * bn_scale + (beta - mean * bn_scale)
    sb = jnp.stack([bn_scale, bn_bias], axis=1).astype(jnp.float32)   # (Cmid, 2)

    # PyTorch conv weight (Cmid, Cin, 3, 3) -> tap-major (9, Cmid, Cin), bf16.
    w1_taps = (jnp.transpose(w1, (2, 3, 0, 1))
               .reshape(9, Cmid, Cin).astype(jnp.bfloat16))
    # 1x1 conv weight (1, Cmid, 1, 1) -> (1, Cmid) row; bias -> (1,) SMEM scalar.
    w2_row = w2.reshape(1, Cmid).astype(jnp.float32)
    b2_vec = b2.reshape(1).astype(jnp.float32)

    # Flatten spatial onto the lane axis (NCHW order -> no transpose pass) and
    # cast to bf16 so the HBM->VMEM DMA moves half the bytes.
    x_flat = x_nchw.reshape(B, Cin, HW).astype(jnp.bfloat16)

    # Lane-aligned halo pad (>= W + 1 lanes on each side of the image).
    pad = ((W + 1 + 127) // 128) * 128

    # Footprint-driven VMEM limit (double-buffered blocks + scratch + live f32).
    est = (2 * (Cin * HW * 2 + 9 * Cmid * Cin * 2 + HW * 4)      # pipelined blocks
           + Cin * (HW + 2 * pad) * 2                            # scratch
           + 2 * Cmid * HW * 4 + Cin * HW * 4                    # acc/h + tap slack
           + 8 * 1024 * 1024)                                    # headroom
    vmem_limit = _pick_vmem_limit(est)

    kernel = functools.partial(_convblock_kernel, img_w=W, pad=pad)

    out_flat = pl.pallas_call(
        kernel,
        out_shape=jax.ShapeDtypeStruct((B, 1, HW), jnp.float32),
        grid=(B,),
        in_specs=[
            pl.BlockSpec((1, Cin, HW), lambda b: (b, 0, 0)),
            pl.BlockSpec((9, Cmid, Cin), lambda b: (0, 0, 0)),
            pl.BlockSpec((Cmid, 2), lambda b: (0, 0)),
            pl.BlockSpec((1, Cmid), lambda b: (0, 0)),
            pl.BlockSpec(memory_space=pltpu.MemorySpace.SMEM),
        ],
        out_specs=pl.BlockSpec((1, 1, HW), lambda b: (b, 0, 0)),
        scratch_shapes=[pltpu.VMEM((Cin, pad + HW + pad), jnp.bfloat16)],
        compiler_params=pltpu.CompilerParams(
            dimension_semantics=("parallel",),
            vmem_limit_bytes=vmem_limit),
    )(x_flat, w1_taps, sb, w2_row, b2_vec)

    # (B, 1, H*W) -> (B, 1, H, W): already NCHW order, reshape is metadata-only.
    return out_flat.reshape(B, 1, H, W)


# ----------------------------------------------------------------------------
# Deterministic parameter construction (PyTorch __init__ shapes, synthetic)
# ----------------------------------------------------------------------------
def make_convblock_params(key, in_channels):
    cmid = in_channels // 2
    k1, k2, k3, k4, k5, k6, k7, k8 = jax.random.split(key, 8)
    w1 = jax.random.normal(k1, (cmid, in_channels, 3, 3), jnp.float32) * 0.05
    b1 = jax.random.normal(k2, (cmid,), jnp.float32) * 0.05
    gamma = 0.5 + jax.random.uniform(k3, (cmid,), jnp.float32)
    beta = 0.1 * jax.random.normal(k4, (cmid,), jnp.float32)
    mean = 0.1 * jax.random.normal(k5, (cmid,), jnp.float32)
    var = 0.5 + jax.random.uniform(k6, (cmid,), jnp.float32)
    w2 = jax.random.normal(k7, (1, cmid, 1, 1), jnp.float32) * 0.05
    b2 = jax.random.normal(k8, (1,), jnp.float32) * 0.05
    return (w1, b1, gamma, beta, mean, var, w2, b2)


# Pure-JAX reference for correctness checking.  With quantize_conv1=True the
# 3x3-conv operands are pre-rounded to bf16, mirroring the kernel's bf16 MXU
# inputs (exact products, f32 accumulation), so a tight tolerance applies.
def convblock_ref(x_nchw, params, quantize_conv1=False):
    w1, b1, gamma, beta, mean, var, w2, b2 = params
    eps = 1e-5
    x = x_nchw
    w = w1
    if quantize_conv1:
        x = x.astype(jnp.bfloat16).astype(jnp.float32)
        w = w.astype(jnp.bfloat16).astype(jnp.float32)
    y = lax.conv_general_dilated(
        x, w, window_strides=(1, 1), padding=((1, 1), (1, 1)),
        dimension_numbers=("NCHW", "OIHW", "NCHW"),
        precision=lax.Precision.HIGHEST)
    y = y + b1[None, :, None, None]
    y = (y - mean[None, :, None, None]) / jnp.sqrt(var + eps)[None, :, None, None]
    y = y * gamma[None, :, None, None] + beta[None, :, None, None]
    y = jnp.maximum(y, 0.0)
    z = lax.conv_general_dilated(
        y, w2, window_strides=(1, 1), padding="VALID",
        dimension_numbers=("NCHW", "OIHW", "NCHW"),
        precision=lax.Precision.HIGHEST)
    return z + b2[None, :, None, None]


# ----------------------------------------------------------------------------
# FMFS heads (the parts whose definitions were provided)
# ----------------------------------------------------------------------------
class FMFSHeadsPallas:
    """conv_4 / conv_3 / conv_2 / conv_1 ConvBlocks of FMFS, on Pallas."""

    def __init__(self, key):
        k4, k3, k2, k1 = jax.random.split(key, 4)
        self.conv_4 = make_convblock_params(k4, 96)
        self.conv_3 = make_convblock_params(k3, 192)
        self.conv_2 = make_convblock_params(k2, 384)
        self.conv_1 = make_convblock_params(k1, 192)

    def __call__(self, feats):
        # feats: dict of NCHW feature maps with channel counts matching __init__.
        return {
            "conv_4": convblock_pallas(feats["conv_4"], self.conv_4),
            "conv_3": convblock_pallas(feats["conv_3"], self.conv_3),
            "conv_2": convblock_pallas(feats["conv_2"], self.conv_2),
            "conv_1": convblock_pallas(feats["conv_1"], self.conv_1),
        }

    def reference(self, feats, quantize_conv1=False):
        return {
            "conv_4": convblock_ref(feats["conv_4"], self.conv_4, quantize_conv1),
            "conv_3": convblock_ref(feats["conv_3"], self.conv_3, quantize_conv1),
            "conv_2": convblock_ref(feats["conv_2"], self.conv_2, quantize_conv1),
            "conv_1": convblock_ref(feats["conv_1"], self.conv_1, quantize_conv1),
        }


if __name__ == "__main__":
    key = jax.random.PRNGKey(0)
    pkey, xkey = jax.random.split(key)
    model = FMFSHeadsPallas(pkey)

    B, H, W = 2, 16, 16   # small spatial size; channel counts from the module
    ks = jax.random.split(xkey, 4)
    feats = {
        "conv_4": jax.random.normal(ks[0], (B, 96, H, W), jnp.float32),
        "conv_3": jax.random.normal(ks[1], (B, 192, H, W), jnp.float32),
        "conv_2": jax.random.normal(ks[2], (B, 384, H, W), jnp.float32),
        "conv_1": jax.random.normal(ks[3], (B, 192, H, W), jnp.float32),
    }

    out = model(feats)
    out = jax.tree_util.tree_map(jax.block_until_ready, out)

    ref_q = model.reference(feats, quantize_conv1=True)    # bf16-aware reference
    ref_f = model.reference(feats, quantize_conv1=False)   # full-f32 reference
    for name in out:
        assert out[name].shape == (B, 1, H, W), (name, out[name].shape)
        if not jnp.allclose(out[name], ref_q[name], atol=2e-2, rtol=2e-2):
            raise AssertionError(f"mismatch vs bf16-aware reference in {name}")
        if not jnp.allclose(out[name], ref_f[name], atol=5e-2, rtol=5e-2):
            raise AssertionError(f"mismatch vs f32 reference in {name}")

    print("KERNEL_OK")
</pallas_src>

<mosaic_0001>
module attributes {stable_mosaic.version = 11 : i64} {
  func.func @_convblock_kernel(%arg0: i32, %arg1: memref<1x96x256xbf16, #tpu.memory_space<vmem>>, %arg2: memref<9x48x96xbf16, #tpu.memory_space<vmem>>, %arg3: memref<48x2xf32, #tpu.memory_space<vmem>>, %arg4: memref<1x48xf32, #tpu.memory_space<vmem>>, %arg5: memref<1xf32, #tpu.memory_space<smem>>, %arg6: memref<1x1x256xf32, #tpu.memory_space<vmem>>, %arg7: memref<96x512xbf16, #tpu.memory_space<vmem>>) attributes {dimension_semantics = [#tpu.dimension_semantics<parallel>], iteration_bounds = array<i64: 2>, scalar_prefetch = 0 : i64, scratch_operands = 1 : i64, tpu.core_type = #tpu.core_type<tc>, window_params = [{transform_indices = @transform_0, window_bounds = array<i64: 1, 96, 256>}, {pipeline_mode = #tpu.pipeline_mode<synchronous>, transform_indices = @transform_1, window_bounds = array<i64: 9, 48, 96>}, {pipeline_mode = #tpu.pipeline_mode<synchronous>, transform_indices = @transform_2, window_bounds = array<i64: 48, 2>}, {pipeline_mode = #tpu.pipeline_mode<synchronous>, transform_indices = @transform_3, window_bounds = array<i64: 1, 48>}, {transform_indices = @transform_4, window_bounds = array<i64: 1>}, {transform_indices = @transform_5, window_bounds = array<i64: 1, 1, 256>}]} {
    %c0 = arith.constant 0 : index
    %c0_0 = arith.constant 0 : index
    %c0_1 = arith.constant 0 : index
    %0 = vector.load %arg1[%c0, %c0_0, %c0_1] : memref<1x96x256xbf16, #tpu.memory_space<vmem>>, vector<1x96x256xbf16>
    %1 = vector.shape_cast %0 : vector<1x96x256xbf16> to vector<96x256xbf16>
    %c0_2 = arith.constant 0 : index
    %c128 = arith.constant 128 : index
    %2 = vector.load %arg7[%c0_2, %c128] : memref<96x512xbf16, #tpu.memory_space<vmem>>, vector<96x256xbf16>
    tpu.vector_store %arg7[%c0_2, %c128], %1 {strides = array<i32>} : memref<96x512xbf16, #tpu.memory_space<vmem>>, vector<96x256xbf16>,
    %cst = arith.constant 0.000000e+00 : bf16
    %3 = vector.broadcast %cst : bf16 to vector<96x16xbf16>
    %c0_3 = arith.constant 0 : index
    %c112 = arith.constant 112 : index
    %4 = vector.load %arg7[%c0_3, %c112] : memref<96x512xbf16, #tpu.memory_space<vmem>>, vector<96x16xbf16>
    tpu.vector_store %arg7[%c0_3, %c112], %3 {strides = array<i32>} : memref<96x512xbf16, #tpu.memory_space<vmem>>, vector<96x16xbf16>,
    %cst_4 = arith.constant 0.000000e+00 : bf16
    %5 = vector.broadcast %cst_4 : bf16 to vector<96x16xbf16>
    %c0_5 = arith.constant 0 : index
    %c384 = arith.constant 384 : index
    %6 = vector.load %arg7[%c0_5, %c384] : memref<96x512xbf16, #tpu.memory_space<vmem>>, vector<96x16xbf16>
    tpu.vector_store %arg7[%c0_5, %c384], %5 {strides = array<i32>} : memref<96x512xbf16, #tpu.memory_space<vmem>>, vector<96x16xbf16>,
    %7 = tpu.iota {dimensions = array<i32: 1>} : vector<1x256xi32>
    %c16_i32 = arith.constant 16 : i32
    %c0_i32 = arith.constant 0 : i32
    %8 = arith.cmpi eq, %c16_i32, %c0_i32 : i32
    %c1_i32 = arith.constant 1 : i32
    %9 = arith.select %8, %c1_i32, %c16_i32 : i32
    %10 = vector.broadcast %9 : i32 to vector<1x256xi32>
    %11 = arith.remsi %7, %10 : vector<1x256xi32>
    %c0_i32_6 = arith.constant 0 : i32
    %12 = vector.broadcast %c0_i32_6 : i32 to vector<1x256xi32>
    %13 = arith.cmpi ne, %11, %12 : vector<1x256xi32>
    %c0_i32_7 = arith.constant 0 : i32
    %14 = vector.broadcast %c0_i32_7 : i32 to vector<1x256xi32>
    %15 = arith.cmpi slt, %11, %14 : vector<1x256xi32>
    %c0_i32_8 = arith.constant 0 : i32
    %16 = arith.cmpi slt, %9, %c0_i32_8 : i32
    %17 = vector.broadcast %16 : i1 to vector<1x256xi1>
    %18 = vector.broadcast %17 : vector<1x256xi1> to vector<1x256xi1>
    %19 = arith.xori %15, %18 : vector<1x256xi1>
    %20 = arith.andi %19, %13 : vector<1x256xi1>
    %21 = vector.broadcast %9 : i32 to vector<1x256xi32>
    %22 = arith.addi %11, %21 : vector<1x256xi32>
    %23 = arith.select %20, %22, %11 : vector<1x256xi1>, vector<1x256xi32>
    %c0_i32_9 = arith.constant 0 : i32
    %24 = vector.broadcast %c0_i32_9 : i32 to vector<1x256xi32>
    %25 = arith.cmpi ne, %23, %24 : vector<1x256xi32>
    %c15_i32 = arith.constant 15 : i32
    %26 = vector.broadcast %c15_i32 : i32 to vector<1x256xi32>
    %27 = arith.cmpi ne, %23, %26 : vector<1x256xi32>
    %cst_10 = arith.constant 0.000000e+00 : f32
    %28 = vector.broadcast %cst_10 : f32 to vector<48x256xf32>
    %c0_11 = arith.constant 0 : index
    %c111 = arith.constant 111 : index
    %29 = vector.load %arg7[%c0_11, %c111] : memref<96x512xbf16, #tpu.memory_space<vmem>>, vector<96x256xbf16>
    %cst_12 = arith.constant 0.000000e+00 : bf16
    %30 = vector.broadcast %cst_12 : bf16 to vector<96x256xbf16>
    %31 = vector.shape_cast %25 : vector<1x256xi1> to vector<1x256xi1>
    %32 = vector.broadcast %31 : vector<1x256xi1> to vector<96x256xi1>
    %33 = arith.select %32, %29, %30 : vector<96x256xi1>, vector<96x256xbf16>
    %c0_13 = arith.constant 0 : index
    %c0_14 = arith.constant 0 : index
    %c0_15 = arith.constant 0 : index
    %34 = vector.load %arg2[%c0_13, %c0_14, %c0_15] : memref<9x48x96xbf16, #tpu.memory_space<vmem>>, vector<1x48x96xbf16>
    %35 = vector.shape_cast %34 : vector<1x48x96xbf16> to vector<48x96xbf16>
    %cst_16 = arith.constant dense<0.000000e+00> : vector<48x256xf32>
    %36 = tpu.matmul %35, %33, %cst_16 {dimension_numbers = #tpu.dot_dimension_numbers<[1], [0], [0], [1], [0, 0, 1, 1], [], []>} : vector<48x96xbf16>, vector<96x256xbf16>, vector<48x256xf32> -> vector<48x256xf32>
    %37 = arith.addf %28, %36 : vector<48x256xf32>
    %c0_17 = arith.constant 0 : index
    %c112_18 = arith.constant 112 : index
    %38 = vector.load %arg7[%c0_17, %c112_18] : memref<96x512xbf16, #tpu.memory_space<vmem>>, vector<96x256xbf16>
    %c1 = arith.constant 1 : index
    %c0_19 = arith.constant 0 : index
    %c0_20 = arith.constant 0 : index
    %39 = vector.load %arg2[%c1, %c0_19, %c0_20] : memref<9x48x96xbf16, #tpu.memory_space<vmem>>, vector<1x48x96xbf16>
    %40 = vector.shape_cast %39 : vector<1x48x96xbf16> to vector<48x96xbf16>
    %cst_21 = arith.constant dense<0.000000e+00> : vector<48x256xf32>
    %41 = tpu.matmul %40, %38, %cst_21 {dimension_numbers = #tpu.dot_dimension_numbers<[1], [0], [0], [1], [0, 0, 1, 1], [], []>} : vector<48x96xbf16>, vector<96x256xbf16>, vector<48x256xf32> -> vector<48x256xf32>
    %42 = arith.addf %37, %41 : vector<48x256xf32>
    %c0_22 = arith.constant 0 : index
    %c113 = arith.constant 113 : index
    %43 = vector.load %arg7[%c0_22, %c113] : memref<96x512xbf16, #tpu.memory_space<vmem>>, vector<96x256xbf16>
    %cst_23 = arith.constant 0.000000e+00 : bf16
    %44 = vector.broadcast %cst_23 : bf16 to vector<96x256xbf16>
    %45 = vector.shape_cast %27 : vector<1x256xi1> to vector<1x256xi1>
    %46 = vector.broadcast %45 : vector<1x256xi1> to vector<96x256xi1>
    %47 = arith.select %46, %43, %44 : vector<96x256xi1>, vector<96x256xbf16>
    %c2 = arith.constant 2 : index
    %c0_24 = arith.constant 0 : index
    %c0_25 = arith.constant 0 : index
    %48 = vector.load %arg2[%c2, %c0_24, %c0_25] : memref<9x48x96xbf16, #tpu.memory_space<vmem>>, vector<1x48x96xbf16>
    %49 = vector.shape_cast %48 : vector<1x48x96xbf16> to vector<48x96xbf16>
    %cst_26 = arith.constant dense<0.000000e+00> : vector<48x256xf32>
    %50 = tpu.matmul %49, %47, %cst_26 {dimension_numbers = #tpu.dot_dimension_numbers<[1], [0], [0], [1], [0, 0, 1, 1], [], []>} : vector<48x96xbf16>, vector<96x256xbf16>, vector<48x256xf32> -> vector<48x256xf32>
    %51 = arith.addf %42, %50 : vector<48x256xf32>
    %c0_27 = arith.constant 0 : index
    %c127 = arith.constant 127 : index
    %52 = vector.load %arg7[%c0_27, %c127] : memref<96x512xbf16, #tpu.memory_space<vmem>>, vector<96x256xbf16>
    %cst_28 = arith.constant 0.000000e+00 : bf16
    %53 = vector.broadcast %cst_28 : bf16 to vector<96x256xbf16>
    %54 = vector.shape_cast %25 : vector<1x256xi1> to vector<1x256xi1>
    %55 = vector.broadcast %54 : vector<1x256xi1> to vector<96x256xi1>
    %56 = arith.select %55, %52, %53 : vector<96x256xi1>, vector<96x256xbf16>
    %c3 = arith.constant 3 : index
    %c0_29 = arith.constant 0 : index
    %c0_30 = arith.constant 0 : index
    %57 = vector.load %arg2[%c3, %c0_29, %c0_30] : memref<9x48x96xbf16, #tpu.memory_space<vmem>>, vector<1x48x96xbf16>
    %58 = vector.shape_cast %57 : vector<1x48x96xbf16> to vector<48x96xbf16>
    %cst_31 = arith.constant dense<0.000000e+00> : vector<48x256xf32>
    %59 = tpu.matmul %58, %56, %cst_31 {dimension_numbers = #tpu.dot_dimension_numbers<[1], [0], [0], [1], [0, 0, 1, 1], [], []>} : vector<48x96xbf16>, vector<96x256xbf16>, vector<48x256xf32> -> vector<48x256xf32>
    %60 = arith.addf %51, %59 : vector<48x256xf32>
    %c0_32 = arith.constant 0 : index
    %c128_33 = arith.constant 128 : index
    %61 = vector.load %arg7[%c0_32, %c128_33] : memref<96x512xbf16, #tpu.memory_space<vmem>>, vector<96x256xbf16>
    %c4 = arith.constant 4 : index
    %c0_34 = arith.constant 0 : index
    %c0_35 = arith.constant 0 : index
    %62 = vector.load %arg2[%c4, %c0_34, %c0_35] : memref<9x48x96xbf16, #tpu.memory_space<vmem>>, vector<1x48x96xbf16>
    %63 = vector.shape_cast %62 : vector<1x48x96xbf16> to vector<48x96xbf16>
    %cst_36 = arith.constant dense<0.000000e+00> : vector<48x256xf32>
    %64 = tpu.matmul %63, %61, %cst_36 {dimension_numbers = #tpu.dot_dimension_numbers<[1], [0], [0], [1], [0, 0, 1, 1], [], []>} : vector<48x96xbf16>, vector<96x256xbf16>, vector<48x256xf32> -> vector<48x256xf32>
    %65 = arith.addf %60, %64 : vector<48x256xf32>
    %c0_37 = arith.constant 0 : index
    %c129 = arith.constant 129 : index
    %66 = vector.load %arg7[%c0_37, %c129] : memref<96x512xbf16, #tpu.memory_space<vmem>>, vector<96x256xbf16>
    %cst_38 = arith.constant 0.000000e+00 : bf16
    %67 = vector.broadcast %cst_38 : bf16 to vector<96x256xbf16>
    %68 = vector.shape_cast %27 : vector<1x256xi1> to vector<1x256xi1>
    %69 = vector.broadcast %68 : vector<1x256xi1> to vector<96x256xi1>
    %70 = arith.select %69, %66, %67 : vector<96x256xi1>, vector<96x256xbf16>
    %c5 = arith.constant 5 : index
    %c0_39 = arith.constant 0 : index
    %c0_40 = arith.constant 0 : index
    %71 = vector.load %arg2[%c5, %c0_39, %c0_40] : memref<9x48x96xbf16, #tpu.memory_space<vmem>>, vector<1x48x96xbf16>
    %72 = vector.shape_cast %71 : vector<1x48x96xbf16> to vector<48x96xbf16>
    %cst_41 = arith.constant dense<0.000000e+00> : vector<48x256xf32>
    %73 = tpu.matmul %72, %70, %cst_41 {dimension_numbers = #tpu.dot_dimension_numbers<[1], [0], [0], [1], [0, 0, 1, 1], [], []>} : vector<48x96xbf16>, vector<96x256xbf16>, vector<48x256xf32> -> vector<48x256xf32>
    %74 = arith.addf %65, %73 : vector<48x256xf32>
    %c0_42 = arith.constant 0 : index
    %c143 = arith.constant 143 : index
    %75 = vector.load %arg7[%c0_42, %c143] : memref<96x512xbf16, #tpu.memory_space<vmem>>, vector<96x256xbf16>
    %cst_43 = arith.constant 0.000000e+00 : bf16
    %76 = vector.broadcast %cst_43 : bf16 to vector<96x256xbf16>
    %77 = vector.shape_cast %25 : vector<1x256xi1> to vector<1x256xi1>
    %78 = vector.broadcast %77 : vector<1x256xi1> to vector<96x256xi1>
    %79 = arith.select %78, %75, %76 : vector<96x256xi1>, vector<96x256xbf16>
    %c6 = arith.constant 6 : index
    %c0_44 = arith.constant 0 : index
    %c0_45 = arith.constant 0 : index
    %80 = vector.load %arg2[%c6, %c0_44, %c0_45] : memref<9x48x96xbf16, #tpu.memory_space<vmem>>, vector<1x48x96xbf16>
    %81 = vector.shape_cast %80 : vector<1x48x96xbf16> to vector<48x96xbf16>
    %cst_46 = arith.constant dense<0.000000e+00> : vector<48x256xf32>
    %82 = tpu.matmul %81, %79, %cst_46 {dimension_numbers = #tpu.dot_dimension_numbers<[1], [0], [0], [1], [0, 0, 1, 1], [], []>} : vector<48x96xbf16>, vector<96x256xbf16>, vector<48x256xf32> -> vector<48x256xf32>
    %83 = arith.addf %74, %82 : vector<48x256xf32>
    %c0_47 = arith.constant 0 : index
    %c144 = arith.constant 144 : index
    %84 = vector.load %arg7[%c0_47, %c144] : memref<96x512xbf16, #tpu.memory_space<vmem>>, vector<96x256xbf16>
    %c7 = arith.constant 7 : index
    %c0_48 = arith.constant 0 : index
    %c0_49 = arith.constant 0 : index
    %85 = vector.load %arg2[%c7, %c0_48, %c0_49] : memref<9x48x96xbf16, #tpu.memory_space<vmem>>, vector<1x48x96xbf16>
    %86 = vector.shape_cast %85 : vector<1x48x96xbf16> to vector<48x96xbf16>
    %cst_50 = arith.constant dense<0.000000e+00> : vector<48x256xf32>
    %87 = tpu.matmul %86, %84, %cst_50 {dimension_numbers = #tpu.dot_dimension_numbers<[1], [0], [0], [1], [0, 0, 1, 1], [], []>} : vector<48x96xbf16>, vector<96x256xbf16>, vector<48x256xf32> -> vector<48x256xf32>
    %88 = arith.addf %83, %87 : vector<48x256xf32>
    %c0_51 = arith.constant 0 : index
    %c145 = arith.constant 145 : index
    %89 = vector.load %arg7[%c0_51, %c145] : memref<96x512xbf16, #tpu.memory_space<vmem>>, vector<96x256xbf16>
    %cst_52 = arith.constant 0.000000e+00 : bf16
    %90 = vector.broadcast %cst_52 : bf16 to vector<96x256xbf16>
    %91 = vector.shape_cast %27 : vector<1x256xi1> to vector<1x256xi1>
    %92 = vector.broadcast %91 : vector<1x256xi1> to vector<96x256xi1>
    %93 = arith.select %92, %89, %90 : vector<96x256xi1>, vector<96x256xbf16>
    %c8 = arith.constant 8 : index
    %c0_53 = arith.constant 0 : index
    %c0_54 = arith.constant 0 : index
    %94 = vector.load %arg2[%c8, %c0_53, %c0_54] : memref<9x48x96xbf16, #tpu.memory_space<vmem>>, vector<1x48x96xbf16>
    %95 = vector.shape_cast %94 : vector<1x48x96xbf16> to vector<48x96xbf16>
    %cst_55 = arith.constant dense<0.000000e+00> : vector<48x256xf32>
    %96 = tpu.matmul %95, %93, %cst_55 {dimension_numbers = #tpu.dot_dimension_numbers<[1], [0], [0], [1], [0, 0, 1, 1], [], []>} : vector<48x96xbf16>, vector<96x256xbf16>, vector<48x256xf32> -> vector<48x256xf32>
    %97 = arith.addf %88, %96 : vector<48x256xf32>
    %c0_56 = arith.constant 0 : index
    %c0_57 = arith.constant 0 : index
    %98 = vector.load %arg3[%c0_56, %c0_57] : memref<48x2xf32, #tpu.memory_space<vmem>>, vector<48x1xf32>
    %c0_58 = arith.constant 0 : index
    %c1_59 = arith.constant 1 : index
    %99 = vector.load %arg3[%c0_58, %c1_59] : memref<48x2xf32, #tpu.memory_space<vmem>>, vector<48x1xf32>
    %100 = vector.broadcast %98 : vector<48x1xf32> to vector<48x256xf32>
    %101 = arith.mulf %97, %100 : vector<48x256xf32>
    %102 = vector.broadcast %99 : vector<48x1xf32> to vector<48x256xf32>
    %103 = arith.addf %101, %102 : vector<48x256xf32>
    %cst_60 = arith.constant 0.000000e+00 : f32
    %104 = vector.broadcast %cst_60 : f32 to vector<48x256xf32>
    %105 = arith.maximumf %103, %104 : vector<48x256xf32>
    %c0_61 = arith.constant 0 : index
    %c0_62 = arith.constant 0 : index
    %106 = vector.load %arg4[%c0_61, %c0_62] : memref<1x48xf32, #tpu.memory_space<vmem>>, vector<1x48xf32>
    %cst_63 = arith.constant dense<0.000000e+00> : vector<1x256xf32>
    %107 = tpu.matmul %106, %105, %cst_63 {dimension_numbers = #tpu.dot_dimension_numbers<[1], [0], [0], [1], [0, 0, 1, 1], [], []>} : vector<1x48xf32>, vector<48x256xf32>, vector<1x256xf32> -> vector<1x256xf32>
    %c0_64 = arith.constant 0 : index
    %108 = memref.load %arg5[%c0_64] : memref<1xf32, #tpu.memory_space<smem>>
    %109 = vector.broadcast %108 : f32 to vector<1x256xf32>
    %110 = arith.addf %107, %109 : vector<1x256xf32>
    %111 = vector.shape_cast %110 : vector<1x256xf32> to vector<1x1x256xf32>
    %c0_65 = arith.constant 0 : index
    %c0_66 = arith.constant 0 : index
    %c0_67 = arith.constant 0 : index
    %112 = vector.load %arg6[%c0_65, %c0_66, %c0_67] : memref<1x1x256xf32, #tpu.memory_space<vmem>>, vector<1x1x256xf32>
    tpu.vector_store %arg6[%c0_65, %c0_66, %c0_67], %111 {strides = array<i32>} : memref<1x1x256xf32, #tpu.memory_space<vmem>>, vector<1x1x256xf32>,
    return
  }
  func.func @transform_0(%arg0: i32) -> (i32, i32, i32) {
    %c0_i32 = arith.constant 0 : i32
    %c0_i32_0 = arith.constant 0 : i32
    %c0_i32_1 = arith.constant 0 : i32
    return %arg0, %c0_i32, %c0_i32_0 : i32, i32, i32
  }
  func.func @transform_1(%arg0: i32) -> (i32, i32, i32) {
    %c0_i32 = arith.constant 0 : i32
    %c0_i32_0 = arith.constant 0 : i32
    %c0_i32_1 = arith.constant 0 : i32
    %c0_i32_2 = arith.constant 0 : i32
    return %c0_i32, %c0_i32_0, %c0_i32_1 : i32, i32, i32
  }
  func.func @transform_2(%arg0: i32) -> (i32, i32) {
    %c0_i32 = arith.constant 0 : i32
    %c0_i32_0 = arith.constant 0 : i32
    %c0_i32_1 = arith.constant 0 : i32
    return %c0_i32, %c0_i32_0 : i32, i32
  }
  func.func @transform_3(%arg0: i32) -> (i32, i32) {
    %c0_i32 = arith.constant 0 : i32
    %c0_i32_0 = arith.constant 0 : i32
    %c0_i32_1 = arith.constant 0 : i32
    return %c0_i32, %c0_i32_0 : i32, i32
  }
  func.func @transform_4(%arg0: i32) -> i32 {
    %c0_i32 = arith.constant 0 : i32
    %c0_i32_0 = arith.constant 0 : i32
    return %c0_i32 : i32
  }
  func.func @transform_5(%arg0: i32) -> (i32, i32, i32) {
    %c0_i32 = arith.constant 0 : i32
    %c0_i32_0 = arith.constant 0 : i32
    %c0_i32_1 = arith.constant 0 : i32
    return %arg0, %c0_i32, %c0_i32_0 : i32, i32, i32
  }
}

</mosaic_0001>

<llo_original>
// kernel: tpu_custom_call.1
$region0: #{tpu_custom_call.1}
  #allocation0 [shape = 'u32[]', space=smem, size = 0x4, offset = 0x4, fixed_abs, tag = 'smem constant byte address 0x4 - core index']
  #allocation1 [shape = 'u32[144,128]{1,0:T(1,128)}', space=vmem, size = 0x12000, scoped, tag = 'internal scratch']
  #allocation2 [shape = 'bf16[96,512]{1,0:T(16,128)(2,1)}', space=vmem, size = 0x18000, scoped, tag = 'scratch operand']
  #allocation3 [shape = 'f32[1]{0:T(128)S(6)}', space=smem, size = 0x200, scoped, tag = 'scoped memory for tpu_custom_call.1']
  %s0 = inlined_call_operand.hbm [shape: bf16[2,96,256], index: 0, kind: input, shape index: {}]
  %s1 = inlined_call_operand.hbm [shape: bf16[9,48,96], index: 1, kind: input, shape index: {}]
  %s2 = inlined_call_operand.vmem [shape: f32[48,2], index: 2, kind: input, shape index: {}]
  %s3 = inlined_call_operand.vmem [shape: f32[1,48], index: 3, kind: input, shape index: {}]
  %s4 = inlined_call_operand.<no memory space> [shape: f32[1], index: 4, kind: input, shape index: {}]
  %s5 = inlined_call_operand.hbm [shape: f32[2,1,256], index: 5, kind: output, shape index: {}]
  %s6 = sld [smem:[#allocation0]]
  $region61: #{tpu_custom_call.1} parent=0
    _
  %s8 = ssub.s32 1, %s6
  %s9 = scalar_select 0, %s8, %s6
  %10 = sst [smem:[#allocation3]] %s4
  $region1: #{tpu_custom_call.1} parent=0
    #allocation4 [shape = 'u8[98304]{0}', space=vmem, size = 0x18000, scoped, tag = 'input window, operand 0']
    #allocation5 [shape = 's32[2]{0}', space=sflag, size = 0x8, scoped, tag = 'scoped memory for tpu_custom_call.1']
    #allocation6 [shape = 's32[2]{0}', space=sflag, size = 0x8, scoped, tag = 'scoped memory for tpu_custom_call.1']
    #allocation7 [shape = 'u8[110592]{0}', space=vmem, size = 0x1b000, scoped, tag = 'input window, operand 1, single buffered']
    #allocation8 [shape = 's32[1]{0}', space=sflag, size = 0x4, scoped, tag = 'scoped memory for tpu_custom_call.1']
    #allocation9 [shape = 'u8[2048]{0}', space=vmem, size = 0x800, scoped, tag = 'output window, operand 0']
    %11 = vsyncpa [#allocation5], 0
    %s12 = scalar_lea.sflag [#allocation5], 1
    %13 = vsyncpa %s12, 0
    %14 = vsyncpa [#allocation8], 0
    %15 = vsyncpa [#allocation6], 0
    %s16 = scalar_lea.sflag [#allocation6], 1
    %17 = vsyncpa %s16, 0
    loop: start=0, step=1, limit=4
    $region2: #{tpu_custom_call.1} parent=1 // loop_pre_header
      _
    $region3: #{tpu_custom_call.1} parent=1 // loop_header
      %s19 = sphi 0, %s23
      %p20 = scmp.ge.s32.totalorder %s19, 4
      %s29 = sphi 0, %s31
      %s32 = sphi 0, %s29
      %s33 = sphi 0, %s32
      %s49 = sphi 0, %s33
      %s53 = sphi 0, %s53
      %s55 = sphi 0, %s53
      %s56 = sphi 0, %s55
      %s70 = sphi 0, %s56
      %s74 = sphi 0, %s74
      %s76 = sphi 0, %s74
      %s77 = sphi 0, %s76
      %s91 = sphi 0, %s77
      %s95 = sphi 0, %s95
      %s97 = sphi 0, %s95
      %s98 = sphi 0, %s97
      %s112 = sphi 0, %s98
      %s116 = sphi 0, %s116
      %s118 = sphi 0, %s116
      %s119 = sphi 0, %s118
      %s133 = sphi 0, %s119
      %s139 = sphi 0, %s141
      %s142 = sphi 0, %s139
      %s143 = sphi 0, %s142
      %s159 = sphi 0, %s143
    $region4: #{tpu_custom_call.1} parent=1 // loop_header_branch
      %22 = sbr.rel (%p20) target = $region8
    $region5: #{tpu_custom_call.1} parent=1 // loop_body
      %s24 = ssub.s32 %s19, 1
      %s25 = ssub.s32 %s19, 2
      %s26 = sadd.s32 %s19, 1
      %s27 = ssub.s32 %s19, %s26
      %p28 = scmp.eq.s32.totalorder %s27, 0
      %s30 = sadd.s32 %s29, 1
      %s31 = scalar_select %p28, %s29, %s30
      %p34 = pneg %p28
      %p35 = scmp.eq.s32.totalorder %s19, 1
      %p36 = por %p34, %p35
      %p37 = scmp.ne.s32.totalorder %s29, %s32
      %p38 = scmp.eq.s32.totalorder %s19, 0
      %p39 = por %p37, %p38
      %p40 = scmp.ne.s32.totalorder %s29, %s32
      %p41 = scmp.eq.s32.totalorder %s24, 1
      %p42 = por %p40, %p41
      %p43 = scmp.ne.s32.totalorder %s32, %s33
      %p44 = scmp.eq.s32.totalorder %s24, 0
      %p45 = por %p43, %p44
      %p46 = scmp.ne.s32.totalorder %s32, %s33
      %p47 = scmp.eq.s32.totalorder %s25, 1
      %p48 = por %p46, %p47
      %p50 = scmp.ne.s32.totalorder %s33, %s49
      %p51 = scmp.eq.s32.totalorder %s25, 0
      %p52 = por %p50, %p51
      %s54 = sadd.s32 %s53, 1
      %p57 = scmp.eq.s32.totalorder %s19, 1
      %p58 = scmp.ne.s32.totalorder %s53, %s55
      %p59 = scmp.eq.s32.totalorder %s19, 0
      %p60 = por %p58, %p59
      %p61 = scmp.ne.s32.totalorder %s53, %s55
      %p62 = scmp.eq.s32.totalorder %s24, 1
      %p63 = por %p61, %p62
      %p64 = scmp.ne.s32.totalorder %s55, %s56
      %p65 = scmp.eq.s32.totalorder %s24, 0
      %p66 = por %p64, %p65
      %p67 = scmp.ne.s32.totalorder %s55, %s56
      %p68 = scmp.eq.s32.totalorder %s25, 1
      %p69 = por %p67, %p68
      %p71 = scmp.ne.s32.totalorder %s56, %s70
      %p72 = scmp.eq.s32.totalorder %s25, 0
      %p73 = por %p71, %p72
      %s75 = sadd.s32 %s74, 1
      %p78 = scmp.eq.s32.totalorder %s19, 1
      %p79 = scmp.ne.s32.totalorder %s74, %s76
      %p80 = scmp.eq.s32.totalorder %s19, 0
      %p81 = por %p79, %p80
      %p82 = scmp.ne.s32.totalorder %s74, %s76
      %p83 = scmp.eq.s32.totalorder %s24, 1
      %p84 = por %p82, %p83
      %p85 = scmp.ne.s32.totalorder %s76, %s77
      %p86 = scmp.eq.s32.totalorder %s24, 0
      %p87 = por %p85, %p86
      %p88 = scmp.ne.s32.totalorder %s76, %s77
      %p89 = scmp.eq.s32.totalorder %s25, 1
      %p90 = por %p88, %p89
      %p92 = scmp.ne.s32.totalorder %s77, %s91
      %p93 = scmp.eq.s32.totalorder %s25, 0
      %p94 = por %p92, %p93
      %s96 = sadd.s32 %s95, 1
      %p99 = scmp.eq.s32.totalorder %s19, 1
      %p100 = scmp.ne.s32.totalorder %s95, %s97
      %p101 = scmp.eq.s32.totalorder %s19, 0
      %p102 = por %p100, %p101
      %p103 = scmp.ne.s32.totalorder %s95, %s97
      %p104 = scmp.eq.s32.totalorder %s24, 1
      %p105 = por %p103, %p104
      %p106 = scmp.ne.s32.totalorder %s97, %s98
      %p107 = scmp.eq.s32.totalorder %s24, 0
      %p108 = por %p106, %p107
      %p109 = scmp.ne.s32.totalorder %s97, %s98
      %p110 = scmp.eq.s32.totalorder %s25, 1
      %p111 = por %p109, %p110
      %p113 = scmp.ne.s32.totalorder %s98, %s112
      %p114 = scmp.eq.s32.totalorder %s25, 0
      %p115 = por %p113, %p114
      %s117 = sadd.s32 %s116, 1
      %p120 = scmp.eq.s32.totalorder %s19, 1
      %p121 = scmp.ne.s32.totalorder %s116, %s118
      %p122 = scmp.eq.s32.totalorder %s19, 0
      %p123 = por %p121, %p122
      %p124 = scmp.ne.s32.totalorder %s116, %s118
      %p125 = scmp.eq.s32.totalorder %s24, 1
      %p126 = por %p124, %p125
      %p127 = scmp.ne.s32.totalorder %s118, %s119
      %p128 = scmp.eq.s32.totalorder %s24, 0
      %p129 = por %p127, %p128
      %p130 = scmp.ne.s32.totalorder %s118, %s119
      %p131 = scmp.eq.s32.totalorder %s25, 1
      %p132 = por %p130, %p131
      %p134 = scmp.ne.s32.totalorder %s119, %s133
      %p135 = scmp.eq.s32.totalorder %s25, 0
      %p136 = por %p134, %p135
      %s137 = ssub.s32 %s19, %s26
      %p138 = scmp.eq.s32.totalorder %s137, 0
      %s140 = sadd.s32 %s139, 1
      %s141 = scalar_select %p138, %s139, %s140
      %p144 = pneg %p138
      %p145 = scmp.eq.s32.totalorder %s19, 1
      %p146 = por %p144, %p145
      %p147 = scmp.ne.s32.totalorder %s139, %s142
      %p148 = scmp.eq.s32.totalorder %s19, 0
      %p149 = por %p147, %p148
      %p150 = scmp.ne.s32.totalorder %s139, %s142
      %p151 = scmp.eq.s32.totalorder %s24, 1
      %p152 = por %p150, %p151
      %p153 = scmp.ne.s32.totalorder %s142, %s143
      %p154 = scmp.eq.s32.totalorder %s24, 0
      %p155 = por %p153, %p154
      %p156 = scmp.ne.s32.totalorder %s142, %s143
      %p157 = scmp.eq.s32.totalorder %s25, 1
      %p158 = por %p156, %p157
      %p160 = scmp.ne.s32.totalorder %s143, %s159
      %p161 = scmp.eq.s32.totalorder %s25, 0
      %p162 = por %p160, %p161
      %p163 = scmp.le.s32.totalorder 1, %s19
      %p164 = scmp.lt.s32.totalorder %s19, 3
      %p165 = pnand %p163, %p164
      %p166 = pneg %p165
      // Predicated region
      $region9: #{tpu_custom_call.1} parent=5 // pred_check
        _
      $region10: #{tpu_custom_call.1} parent=5 // pred_check_branch
        %168 = sbr.rel (%p165) target = $region12
      $region11: #{tpu_custom_call.1} parent=5 // pred_region
        %s169 = ssub.s32 %s19, 1
        // Predicated region
        $region13: #{tpu_custom_call.1} parent=11 // pred_check
          %p170 = pneg %p66
        $region14: #{tpu_custom_call.1} parent=11 // pred_check_branch
          %172 = sbr.rel (%p170) target = $region16
        $region15: #{tpu_custom_call.1} parent=11 // pred_region
          %s174 = ssub.s32 3456, 3456
          %175 = vsyncadd [#allocation8], %s174
          %s176 = sshll.u32 [#allocation7], 4
          %s177 = int_to_ptr.vmem [resolvable:$true] %s176
          %182 = dma.hbm_to_vmem [thread:$0]  %s1, 3456, %s177, [#allocation8], 64, 64, 4
        $region16: #{tpu_custom_call.1} parent=11 // pred_fallthru
          _
        // Predicated region
        $region17: #{tpu_custom_call.1} parent=11 // pred_check
          %p183 = pneg %p87
        $region18: #{tpu_custom_call.1} parent=11 // pred_check_branch
          %185 = sbr.rel (%p183) target = $region20
        $region19: #{tpu_custom_call.1} parent=11 // pred_region
          _
        $region20: #{tpu_custom_call.1} parent=11 // pred_fallthru
          _
        // Predicated region
        $region21: #{tpu_custom_call.1} parent=11 // pred_check
          %p186 = pneg %p108
        $region22: #{tpu_custom_call.1} parent=11 // pred_check_branch
          %188 = sbr.rel (%p186) target = $region24
        $region23: #{tpu_custom_call.1} parent=11 // pred_region
          _
        $region24: #{tpu_custom_call.1} parent=11 // pred_fallthru
          _
        // Predicated region
        $region25: #{tpu_custom_call.1} parent=11 // pred_check
          %p189 = pneg %p129
        $region26: #{tpu_custom_call.1} parent=11 // pred_check_branch
          %191 = sbr.rel (%p189) target = $region28
        $region27: #{tpu_custom_call.1} parent=11 // pred_region
          _
        $region28: #{tpu_custom_call.1} parent=11 // pred_fallthru
          _
      $region12: #{tpu_custom_call.1} parent=5 // pred_fallthru
        _
      %p192 = scmp.lt.s32.totalorder %s19, 2
      // Predicated region
      $region29: #{tpu_custom_call.1} parent=5 // pred_check
        %p193 = pneg %p192
      $region30: #{tpu_custom_call.1} parent=5 // pred_check_branch
        %195 = sbr.rel (%p193) target = $region32
      $region31: #{tpu_custom_call.1} parent=5 // pred_region
        // Predicated region
        $region33: #{tpu_custom_call.1} parent=31 // pred_check
          %p196 = pneg %p39
        $region34: #{tpu_custom_call.1} parent=31 // pred_check_branch
          %198 = sbr.rel (%p196) target = $region36
        $region35: #{tpu_custom_call.1} parent=31 // pred_region
          %s199 = sand.u32 %s29, 1
          %s200 = scalar_lea.sflag [#allocation5], %s199
          %s201 = sand.u32 %s29, 1
          %s202 = smul.addr %s201, 96
          %s203 = scalar_lea.vmem [#allocation4], %s202
          %s205 = ssub.s32 1536, 1536
          %206 = vsyncadd %s200, %s205
          %s207 = smul.addr %s19, 24
          %s208 = smul.addr %s207, 64
          %s209 = scalar_lea.hbm %s0, %s208
          %s210 = sshll.u32 %s203, 4
          %s211 = int_to_ptr.vmem [resolvable:$true] %s210
          %216 = dma.hbm_to_vmem [thread:$0]  %s209, 1536, %s211, %s200, 128, 128, 8
        $region36: #{tpu_custom_call.1} parent=31 // pred_fallthru
          _
      $region32: #{tpu_custom_call.1} parent=5 // pred_fallthru
        _
      %p217 = scmp.le.s32.totalorder 1, %s19
      %p218 = scmp.lt.s32.totalorder %s19, 3
      %p219 = pnand %p217, %p218
      %p220 = pneg %p219
      // Predicated region
      $region37: #{tpu_custom_call.1} parent=5 // pred_check
        _
      $region38: #{tpu_custom_call.1} parent=5 // pred_check_branch
        %222 = sbr.rel (%p219) target = $region40
      $region39: #{tpu_custom_call.1} parent=5 // pred_region
        %s223 = ssub.s32 %s19, 1
        %s224 = sand.u32 %s32, 1
        %s225 = scalar_lea.sflag [#allocation5], %s224
        %s226 = sand.u32 %s32, 1
        %s227 = smul.addr %s226, 96
        %s228 = scalar_lea.vmem [#allocation4], %s227
        // Predicated region
        $region41: #{tpu_custom_call.1} parent=39 // pred_check
          %p229 = pneg %p45
        $region42: #{tpu_custom_call.1} parent=39 // pred_check_branch
          %231 = sbr.rel (%p229) target = $region44
        $region43: #{tpu_custom_call.1} parent=39 // pred_region
          %232 = dma.done %s225, 1536
        $region44: #{tpu_custom_call.1} parent=39 // pred_fallthru
          _
        // Predicated region
        $region45: #{tpu_custom_call.1} parent=39 // pred_check
          %p233 = pneg %p66
        $region46: #{tpu_custom_call.1} parent=39 // pred_check_branch
          %235 = sbr.rel (%p233) target = $region48
        $region47: #{tpu_custom_call.1} parent=39 // pred_region
          %236 = dma.done [#allocation8], 3456
        $region48: #{tpu_custom_call.1} parent=39 // pred_fallthru
          _
        %s237 = sand.u32 %s32, 1
        %s238 = scalar_lea.sflag [#allocation5], %s237
        %s239 = sand.u32 %s32, 1
        %s240 = smul.addr %s239, 96
        %s241 = scalar_lea.vmem [#allocation4], %s240
        %p242 = pneg %p45
        %p243 = pneg %p42
        %p244 = pneg %p66
        %p245 = pneg %p63
        %p246 = pneg %p87
        %p247 = pneg %p84
        %p248 = pneg %p108
        %p249 = pneg %p105
        %p250 = pneg %p129
        %p251 = pneg %p126
        %p252 = pneg %p155
        %p253 = pneg %p152
        %s254 = sand.u32 %s142, 1
        %s255 = scalar_lea.sflag [#allocation6], %s254
        %s256 = sand.u32 %s142, 1
        %s257 = smul.addr %s256, 2
        %s258 = scalar_lea.vmem [#allocation9], %s257
        %v262 = vld [vmem:[%s228] sm:$0xff]
        %v263 = vld [vmem:[%s228 + $0x8] sm:$0xff]
        %v264 = vld [vmem:[%s228 + $0x10] sm:$0xff]
        %v265 = vld [vmem:[%s228 + $0x18] sm:$0xff]
        %v266 = vld [vmem:[%s228 + $0x20] sm:$0xff]
        %v267 = vld [vmem:[%s228 + $0x28] sm:$0xff]
        %v268 = vld [vmem:[%s228 + $0x30] sm:$0xff]
        %v269 = vld [vmem:[%s228 + $0x38] sm:$0xff]
        %v270 = vld [vmem:[%s228 + $0x40] sm:$0xff]
        %v271 = vld [vmem:[%s228 + $0x48] sm:$0xff]
        %v272 = vld [vmem:[%s228 + $0x50] sm:$0xff]
        %v273 = vld [vmem:[%s228 + $0x58] sm:$0xff]
        %v286 = vunpack.c.l.b16 %v262
        %v287 = vunpack.c.h.b16 %v262
        %v288 = vunpack.c.l.b16 %v263
        %v289 = vunpack.c.h.b16 %v263
        %v290 = vunpack.c.l.b16 %v264
        %v291 = vunpack.c.h.b16 %v264
        %v292 = vunpack.c.l.b16 %v265
        %v293 = vunpack.c.h.b16 %v265
        %v294 = vunpack.c.l.b16 %v266
        %v295 = vunpack.c.h.b16 %v266
        %v296 = vunpack.c.l.b16 %v267
        %v297 = vunpack.c.h.b16 %v267
        %v298 = vunpack.c.l.b16 %v268
        %v299 = vunpack.c.h.b16 %v268
        %v300 = vunpack.c.l.b16 %v269
        %v301 = vunpack.c.h.b16 %v269
        %v302 = vunpack.c.l.b16 %v270
        %v303 = vunpack.c.h.b16 %v270
        %v304 = vunpack.c.l.b16 %v271
        %v305 = vunpack.c.h.b16 %v271
        %v306 = vunpack.c.l.b16 %v272
        %v307 = vunpack.c.h.b16 %v272
        %v308 = vunpack.c.l.b16 %v273
        %v309 = vunpack.c.h.b16 %v273
        %v310 = vpack.c.b16 %v288, %v286
        %v311 = vpack.c.b16 %v289, %v287
        %v312 = vpack.c.b16 %v292, %v290
        %v313 = vpack.c.b16 %v293, %v291
        %v314 = vpack.c.b16 %v296, %v294
        %v315 = vpack.c.b16 %v297, %v295
        %v316 = vpack.c.b16 %v300, %v298
        %v317 = vpack.c.b16 %v301, %v299
        %v318 = vpack.c.b16 %v304, %v302
        %v319 = vpack.c.b16 %v305, %v303
        %v320 = vpack.c.b16 %v308, %v306
        %v321 = vpack.c.b16 %v309, %v307
        %334 = vst [vmem:[#allocation2 + $0x8] sm:$0xff] %v310
        %335 = vst [vmem:[#allocation2 + $0x10] sm:$0xff] %v311
        %336 = vst [vmem:[#allocation2 + $0x28] sm:$0xff] %v312
        %337 = vst [vmem:[#allocation2 + $0x30] sm:$0xff] %v313
        %338 = vst [vmem:[#allocation2 + $0x48] sm:$0xff] %v314
        %339 = vst [vmem:[#allocation2 + $0x50] sm:$0xff] %v315
        %340 = vst [vmem:[#allocation2 + $0x68] sm:$0xff] %v316
        %341 = vst [vmem:[#allocation2 + $0x70] sm:$0xff] %v317
        %342 = vst [vmem:[#allocation2 + $0x88] sm:$0xff] %v318
        %343 = vst [vmem:[#allocation2 + $0x90] sm:$0xff] %v319
        %344 = vst [vmem:[#allocation2 + $0xa8] sm:$0xff] %v320
        %345 = vst [vmem:[#allocation2 + $0xb0] sm:$0xff] %v321
        %vm346 = vcmask 1048448
        %347 = vst.msk [vmem:[#allocation2] sm:$0xff] %vm346, 0
        %348 = vst.msk [vmem:[#allocation2 + $0x20] sm:$0xff] %vm346, 0
        %349 = vst.msk [vmem:[#allocation2 + $0x40] sm:$0xff] %vm346, 0
        %350 = vst.msk [vmem:[#allocation2 + $0x60] sm:$0xff] %vm346, 0
        %351 = vst.msk [vmem:[#allocation2 + $0x80] sm:$0xff] %vm346, 0
        %352 = vst.msk [vmem:[#allocation2 + $0xa0] sm:$0xff] %vm346, 0
        %vm353 = vcmask 130048
        %354 = vst.msk [vmem:[#allocation2 + $0x18] sm:$0xff] %vm353, 0
        %355 = vst.msk [vmem:[#allocation2 + $0x38] sm:$0xff] %vm353, 0
        %356 = vst.msk [vmem:[#allocation2 + $0x58] sm:$0xff] %vm353, 0
        %357 = vst.msk [vmem:[#allocation2 + $0x78] sm:$0xff] %vm353, 0
        %358 = vst.msk [vmem:[#allocation2 + $0x98] sm:$0xff] %vm353, 0
        %359 = vst.msk [vmem:[#allocation2 + $0xb8] sm:$0xff] %vm353, 0
        %v360 = vlaneseq
        %v361 = vand.u32 %v360, 127
        %v362 = vadd.s32 %v361, 128
        %vm363 = vcmp.lt.s32.totalorder %v361, 0
        %v364 = vsub.s32 0, %v361
        %v365 = vsel %vm363, %v364, %v361
        %v366 = vshrl.u32 %v365, 4
        %v367 = vand.u32 %v365, 15
        %v368 = vsub.s32 0, %v367
        %v369 = vsel %vm363, %v368, %v367
        %vm370 = vcmp.lt.s32.totalorder %v362, 0
        %v371 = vsub.s32 0, %v362
        %v372 = vsel %vm370, %v371, %v362
        %v373 = vshrl.u32 %v372, 4
        %v374 = vand.u32 %v372, 15
        %v375 = vsub.s32 0, %v374
        %v376 = vsel %vm370, %v375, %v374
        %vm377 = vcmp.ne.s32.totalorder %v369, 0
        %vm378 = vcmp.ne.s32.totalorder %v376, 0
        %vm379 = vcmp.lt.s32.totalorder %v369, 0
        %vm380 = vcmp.lt.s32.totalorder %v376, 0
        %vm381 = vmand %vm379, %vm377
        %vm382 = vmand %vm380, %vm378
        %v383 = vadd.s32 %v369, 16
        %v384 = vadd.s32 %v376, 16
        %v385 = vsel %vm381, %v383, %v369
        %v386 = vsel %vm382, %v384, %v376
        %vm387 = vcmp.ne.s32.totalorder %v385, 0
        %vm388 = vcmp.ne.s32.totalorder %v386, 0
        %vm389 = vcmp.ne.s32.totalorder %v385, 15
        %vm390 = vcmp.ne.s32.totalorder %v386, 15
        %v391 = vld [vmem:[#allocation2] sm:$0xff]
        %v392 = vld [vmem:[#allocation2 + $0x8] sm:$0xff]
        %v393 = vld [vmem:[#allocation2 + $0x10] sm:$0xff]
        %v394 = vld [vmem:[#allocation2 + $0x20] sm:$0xff]
        %v395 = vld [vmem:[#allocation2 + $0x28] sm:$0xff]
        %v396 = vld [vmem:[#allocation2 + $0x30] sm:$0xff]
        %v397 = vld [vmem:[#allocation2 + $0x40] sm:$0xff]
        %v398 = vld [vmem:[#allocation2 + $0x48] sm:$0xff]
        %v399 = vld [vmem:[#allocation2 + $0x50] sm:$0xff]
        %v400 = vld [vmem:[#allocation2 + $0x60] sm:$0xff]
        %v401 = vld [vmem:[#allocation2 + $0x68] sm:$0xff]
        %v402 = vld [vmem:[#allocation2 + $0x70] sm:$0xff]
        %v403 = vld [vmem:[#allocation2 + $0x80] sm:$0xff]
        %v404 = vld [vmem:[#allocation2 + $0x88] sm:$0xff]
        %v405 = vld [vmem:[#allocation2 + $0x90] sm:$0xff]
        %v406 = vld [vmem:[#allocation2 + $0xa0] sm:$0xff]
        %v407 = vld [vmem:[#allocation2 + $0xa8] sm:$0xff]
        %v408 = vld [vmem:[#allocation2 + $0xb0] sm:$0xff]
        %v409 = vsel %vm387, 1, 0
        %v410 = vsel %vm388, 1, 0
        %vm411 = vcmp.eq.s32.totalorder %v409, 1
        %vm412 = vcmp.eq.s32.totalorder %v410, 1
        %vm413 = vmpackc.low %vm412, %vm411
        %v414 = vsel %vm413, 65537, 0
        %v415 = vlaneseq
        %v416 = vshrl.u32 %v415, 7
        %v417 = vsub.s32 0, %v416
        %v418 = vrot.slane %v414, %v417
        %v419 = vlaneseq
        %v420 = vshrl.u32 %v419, 7
        %v421 = vsub.s32 4, %v420
        %v422 = vrot.slane %v414, %v421
        %423 = vrot.lane.b32.xlu0 %v418, 111
        %v424 = vpop.permute.xlu0 %423
        %425 = vrot.lane.b32.xlu0 %v422, 111
        %v426 = vpop.permute.xlu0 %425
        %vm427 = vcmask 908288
        %v428 = vsel %vm427, %v424, %v426
        %vm429 = vcmp.ne.s16.totalorder %v424, 0
        %vm430 = vcmp.ne.s16.totalorder %v428, 0
        %vm431 = vcmp.ne.s16.totalorder %v426, 0
        %v432 = vsel %vm429, %v391, 0
        %v433 = vsel %vm430, %v392, 0
        %v434 = vsel %vm431, %v393, 0
        %v435 = vsel %vm429, %v394, 0
        %v436 = vsel %vm430, %v395, 0
        %v437 = vsel %vm431, %v396, 0
        %v438 = vsel %vm429, %v397, 0
        %v439 = vsel %vm430, %v398, 0
        %v440 = vsel %vm431, %v399, 0
        %v441 = vsel %vm429, %v400, 0
        %v442 = vsel %vm430, %v401, 0
        %v443 = vsel %vm431, %v402, 0
        %v444 = vsel %vm429, %v403, 0
        %v445 = vsel %vm430, %v404, 0
        %v446 = vsel %vm431, %v405, 0
        %v447 = vsel %vm429, %v406, 0
        %v448 = vsel %vm430, %v407, 0
        %v449 = vsel %vm431, %v408, 0
        %v450 = vld [vmem:[#allocation7] sm:$0xf]
        %v451 = vld [vmem:[#allocation7 + $0x4] sm:$0xf]
        %v452 = vld [vmem:[#allocation7 + $0x8] sm:$0xf]
        %v453 = vld [vmem:[#allocation7 + $0xc] sm:$0xf]
        %v454 = vld [vmem:[#allocation7 + $0x10] sm:$0xf]
        %v455 = vld [vmem:[#allocation7 + $0x14] sm:$0xf]
        %s456 = scalar_lea.vmem [#allocation7], 24
        %v457 = vld [vmem:[%s456] sm:$0xf]
        %v458 = vld [vmem:[%s456 + $0x4] sm:$0xf]
        %v459 = vld [vmem:[%s456 + $0x8] sm:$0xf]
        %v460 = vld [vmem:[%s456 + $0xc] sm:$0xf]
        %v461 = vld [vmem:[%s456 + $0x10] sm:$0xf]
        %v462 = vld [vmem:[%s456 + $0x14] sm:$0xf]
        %v469 = vunpack.c.l.b16 %v457
        %v470 = vunpack.c.l.b16 %v458
        %v471 = vunpack.c.l.b16 %v459
        %v472 = vunpack.c.l.b16 %v460
        %v473 = vunpack.c.l.b16 %v461
        %v474 = vunpack.c.l.b16 %v462
        %v475 = vpack.c.b16 %v470, %v469
        %v476 = vpack.c.b16 %v472, %v471
        %v477 = vpack.c.b16 %v474, %v473
        %496 = vrot.lane.b32.xlu0 %v391, 16
        %v497 = vpop.permute.xlu0 %496
        %498 = vrot.lane.b32.xlu0 %v392, 16
        %v499 = vpop.permute.xlu0 %498
        %500 = vrot.lane.b32.xlu0 %v393, 16
        %v501 = vpop.permute.xlu0 %500
        %502 = vrot.lane.b32.xlu0 %v394, 16
        %v503 = vpop.permute.xlu0 %502
        %504 = vrot.lane.b32.xlu0 %v395, 16
        %v505 = vpop.permute.xlu0 %504
        %506 = vrot.lane.b32.xlu0 %v396, 16
        %v507 = vpop.permute.xlu0 %506
        %508 = vrot.lane.b32.xlu0 %v397, 16
        %v509 = vpop.permute.xlu0 %508
        %510 = vrot.lane.b32.xlu0 %v398, 16
        %v511 = vpop.permute.xlu0 %510
        %512 = vrot.lane.b32.xlu0 %v399, 16
        %v513 = vpop.permute.xlu0 %512
        %514 = vrot.lane.b32.xlu0 %v400, 16
        %v515 = vpop.permute.xlu0 %514
        %516 = vrot.lane.b32.xlu0 %v401, 16
        %v517 = vpop.permute.xlu0 %516
        %518 = vrot.lane.b32.xlu0 %v402, 16
        %v519 = vpop.permute.xlu0 %518
        %520 = vrot.lane.b32.xlu0 %v403, 16
        %v521 = vpop.permute.xlu0 %520
        %522 = vrot.lane.b32.xlu0 %v404, 16
        %v523 = vpop.permute.xlu0 %522
        %524 = vrot.lane.b32.xlu0 %v405, 16
        %v525 = vpop.permute.xlu0 %524
        %526 = vrot.lane.b32.xlu0 %v406, 16
        %v527 = vpop.permute.xlu0 %526
        %528 = vrot.lane.b32.xlu0 %v407, 16
        %v529 = vpop.permute.xlu0 %528
        %530 = vrot.lane.b32.xlu0 %v408, 16
        %v531 = vpop.permute.xlu0 %530
        %vm532 = vcmask 130048
        %v533 = vsel %vm532, %v497, %v499
        %v534 = vsel %vm532, %v499, %v501
        %v535 = vsel %vm532, %v503, %v505
        %v536 = vsel %vm532, %v505, %v507
        %v537 = vsel %vm532, %v509, %v511
        %v538 = vsel %vm532, %v511, %v513
        %v539 = vsel %vm532, %v515, %v517
        %v540 = vsel %vm532, %v517, %v519
        %v541 = vsel %vm532, %v521, %v523
        %v542 = vsel %vm532, %v523, %v525
        %v543 = vsel %vm532, %v527, %v529
        %v544 = vsel %vm532, %v529, %v531
        %vm557 = vcmask 785408
        %v559 = vsel %vm557, %v475, 0
        %v562 = vsel %vm557, %v476, 0
        %v565 = vsel %vm557, %v477, 0
        %567 = vmatprep.subr.bf16.mxu0 %v534
        %568 = vmatpush1.bf16.msra.mxu0 %v533
        %569 = vmatprep.subr.bf16.mxu0 %v536
        %570 = vmatpush1.bf16.msra.mxu0 %v535
        %571 = vmatprep.subr.bf16.mxu0 %v538
        %572 = vmatpush1.bf16.msra.mxu0 %v537
        %573 = vmatprep.subr.bf16.mxu0 %v540
        %574 = vmatpush1.bf16.msra.mxu0 %v539
        %575 = vmatprep.subr.bf16.mxu0 %v542
        %576 = vmatpush1.bf16.msra.mxu0 %v541
        %577 = vmatprep.subr.bf16.mxu0 %v544
        %578 = vmatpush1.bf16.msra.mxu0 %v543
        %579 = vmatprep.subr.bf16.mxu0 0
        %580 = vmatpush1.bf16.msra.mxu0 0
        %581 = vmatprep.subr.bf16.mxu0 0
        %582 = vmatpush1.bf16.msra.mxu0 0
        %583 = vmatprep.subr.bf16.mxu0 0
        %584 = vmatpush1.bf16.msra.mxu0 0
        %585 = vmatprep.subr.bf16.mxu0 0
        %586 = vmatpush1.bf16.msra.mxu0 0
        %587 = vmatprep.subr.bf16.mxu0 0
        %588 = vmatpush1.bf16.msra.mxu0 0
        %589 = vmatprep.subr.bf16.mxu0 0
        %590 = vmatpush1.bf16.msra.mxu0 0
        %591 = vmatprep.subr.bf16.mxu0 0
        %592 = vmatpush1.bf16.msra.mxu0 0
        %593 = vmatprep.subr.bf16.mxu0 0
        %594 = vmatpush1.bf16.msra.mxu0 0
        %595 = vmatprep.subr.bf16.mxu0 0
        %596 = vmatpush1.bf16.msra.mxu0 0
        %597 = vmatprep.subr.bf16.mxu0 0
        %598 = vmatpush1.bf16.msra.mxu0 0
        %599 = vmatprep.mubr.bf16.mxu0 0
        %600 = vmatmul.mubr.bf16.gmra.mrb[0].mxu0 %v559
        %v601 = vpop.f32.mrb[0].mxu0
        %v602 = vadd.f32 0.0, %v601
        %v603 = vpop.f32.mrb[0].mxu0
        %v604 = vadd.f32 0.0, %v603
        %v605 = vpop.f32.mrb[0].mxu0
        %v606 = vadd.f32 0.0, %v605
        %v607 = vpop.f32.mrb[0].mxu0
        %v608 = vadd.f32 0.0, %v607
        %609 = vmatprep.mubr.bf16.mxu0 0
        %610 = vmatmul.mubr.bf16.gmra.mrb[0].mxu0 %v562
        %v611 = vpop.f32.mrb[0].mxu0
        %v612 = vadd.f32 0.0, %v611
        %v613 = vpop.f32.mrb[0].mxu0
        %v614 = vadd.f32 0.0, %v613
        %v615 = vpop.f32.mrb[0].mxu0
        %v616 = vadd.f32 0.0, %v615
        %v617 = vpop.f32.mrb[0].mxu0
        %v618 = vadd.f32 0.0, %v617
        %619 = vmatprep.mubr.bf16.mxu0 0
        %620 = vmatmul.mubr.bf16.gmra.mrb[0].mxu0 %v565
        %v621 = vpop.f32.mrb[0].mxu0
        %v622 = vadd.f32 0.0, %v621
        %v623 = vpop.f32.mrb[0].mxu0
        %v624 = vadd.f32 0.0, %v623
        %v625 = vpop.f32.mrb[0].mxu0
        %v626 = vadd.f32 0.0, %v625
        %v627 = vpop.f32.mrb[0].mxu0
        %v628 = vadd.f32 0.0, %v627
        %629 = vdwg.mxu0
        %v636 = vunpack.c.l.b16 %v450
        %v637 = vunpack.c.l.b16 %v451
        %v638 = vunpack.c.l.b16 %v452
        %v639 = vunpack.c.l.b16 %v453
        %v640 = vunpack.c.l.b16 %v454
        %v641 = vunpack.c.l.b16 %v455
        %v642 = vpack.c.b16 %v637, %v636
        %v643 = vpack.c.b16 %v639, %v638
        %v644 = vpack.c.b16 %v641, %v640
        %663 = vrot.lane.b32.xlu0 %v432, 17
        %v664 = vpop.permute.xlu0 %663
        %665 = vrot.lane.b32.xlu0 %v433, 17
        %v666 = vpop.permute.xlu0 %665
        %667 = vrot.lane.b32.xlu0 %v434, 17
        %v668 = vpop.permute.xlu0 %667
        %669 = vrot.lane.b32.xlu0 %v435, 17
        %v670 = vpop.permute.xlu0 %669
        %671 = vrot.lane.b32.xlu0 %v436, 17
        %v672 = vpop.permute.xlu0 %671
        %673 = vrot.lane.b32.xlu0 %v437, 17
        %v674 = vpop.permute.xlu0 %673
        %675 = vrot.lane.b32.xlu0 %v438, 17
        %v676 = vpop.permute.xlu0 %675
        %677 = vrot.lane.b32.xlu0 %v439, 17
        %v678 = vpop.permute.xlu0 %677
        %679 = vrot.lane.b32.xlu0 %v440, 17
        %v680 = vpop.permute.xlu0 %679
        %681 = vrot.lane.b32.xlu0 %v441, 17
        %v682 = vpop.permute.xlu0 %681
        %683 = vrot.lane.b32.xlu0 %v442, 17
        %v684 = vpop.permute.xlu0 %683
        %685 = vrot.lane.b32.xlu0 %v443, 17
        %v686 = vpop.permute.xlu0 %685
        %687 = vrot.lane.b32.xlu0 %v444, 17
        %v688 = vpop.permute.xlu0 %687
        %689 = vrot.lane.b32.xlu0 %v445, 17
        %v690 = vpop.permute.xlu0 %689
        %691 = vrot.lane.b32.xlu0 %v446, 17
        %v692 = vpop.permute.xlu0 %691
        %693 = vrot.lane.b32.xlu0 %v447, 17
        %v694 = vpop.permute.xlu0 %693
        %695 = vrot.lane.b32.xlu0 %v448, 17
        %v696 = vpop.permute.xlu0 %695
        %697 = vrot.lane.b32.xlu0 %v449, 17
        %v698 = vpop.permute.xlu0 %697
        %vm699 = vcmask 138240
        %v700 = vsel %vm699, %v664, %v666
        %v701 = vsel %vm699, %v666, %v668
        %v702 = vsel %vm699, %v670, %v672
        %v703 = vsel %vm699, %v672, %v674
        %v704 = vsel %vm699, %v676, %v678
        %v705 = vsel %vm699, %v678, %v680
        %v706 = vsel %vm699, %v682, %v684
        %v707 = vsel %vm699, %v684, %v686
        %v708 = vsel %vm699, %v688, %v690
        %v709 = vsel %vm699, %v690, %v692
        %v710 = vsel %vm699, %v694, %v696
        %v711 = vsel %vm699, %v696, %v698
        %v725 = vsel %vm557, %v642, 0
        %v728 = vsel %vm557, %v643, 0
        %v731 = vsel %vm557, %v644, 0
        %733 = vmatprep.subr.bf16.mxu0 %v701
        %734 = vmatpush1.bf16.msra.mxu0 %v700
        %735 = vmatprep.subr.bf16.mxu0 %v703
        %736 = vmatpush1.bf16.msra.mxu0 %v702
        %737 = vmatprep.subr.bf16.mxu0 %v705
        %738 = vmatpush1.bf16.msra.mxu0 %v704
        %739 = vmatprep.subr.bf16.mxu0 %v707
        %740 = vmatpush1.bf16.msra.mxu0 %v706
        %741 = vmatprep.subr.bf16.mxu0 %v709
        %742 = vmatpush1.bf16.msra.mxu0 %v708
        %743 = vmatprep.subr.bf16.mxu0 %v711
        %744 = vmatpush1.bf16.msra.mxu0 %v710
        %745 = vmatprep.subr.bf16.mxu0 0
        %746 = vmatpush1.bf16.msra.mxu0 0
        %747 = vmatprep.subr.bf16.mxu0 0
        %748 = vmatpush1.bf16.msra.mxu0 0
        %749 = vmatprep.subr.bf16.mxu0 0
        %750 = vmatpush1.bf16.msra.mxu0 0
        %751 = vmatprep.subr.bf16.mxu0 0
        %752 = vmatpush1.bf16.msra.mxu0 0
        %753 = vmatprep.subr.bf16.mxu0 0
        %754 = vmatpush1.bf16.msra.mxu0 0
        %755 = vmatprep.subr.bf16.mxu0 0
        %756 = vmatpush1.bf16.msra.mxu0 0
        %757 = vmatprep.subr.bf16.mxu0 0
        %758 = vmatpush1.bf16.msra.mxu0 0
        %759 = vmatprep.subr.bf16.mxu0 0
        %760 = vmatpush1.bf16.msra.mxu0 0
        %761 = vmatprep.subr.bf16.mxu0 0
        %762 = vmatpush1.bf16.msra.mxu0 0
        %763 = vmatprep.subr.bf16.mxu0 0
        %764 = vmatpush1.bf16.msra.mxu0 0
        %765 = vmatprep.mubr.bf16.mxu0 0
        %766 = vmatmul.mubr.bf16.gmra.mrb[0].mxu0 %v725
        %v767 = vpop.f32.mrb[0].mxu0
        %v768 = vadd.f32 %v602, %v767
        %v769 = vpop.f32.mrb[0].mxu0
        %v770 = vadd.f32 %v604, %v769
        %v771 = vpop.f32.mrb[0].mxu0
        %v772 = vadd.f32 %v606, %v771
        %v773 = vpop.f32.mrb[0].mxu0
        %v774 = vadd.f32 %v608, %v773
        %775 = vmatprep.mubr.bf16.mxu0 0
        %776 = vmatmul.mubr.bf16.gmra.mrb[0].mxu0 %v728
        %v777 = vpop.f32.mrb[0].mxu0
        %v778 = vadd.f32 %v612, %v777
        %v779 = vpop.f32.mrb[0].mxu0
        %v780 = vadd.f32 %v614, %v779
        %v781 = vpop.f32.mrb[0].mxu0
        %v782 = vadd.f32 %v616, %v781
        %v783 = vpop.f32.mrb[0].mxu0
        %v784 = vadd.f32 %v618, %v783
        %785 = vmatprep.mubr.bf16.mxu0 0
        %786 = vmatmul.mubr.bf16.gmra.mrb[0].mxu0 %v731
        %v787 = vpop.f32.mrb[0].mxu0
        %v788 = vadd.f32 %v622, %v787
        %v789 = vpop.f32.mrb[0].mxu0
        %v790 = vadd.f32 %v624, %v789
        %v791 = vpop.f32.mrb[0].mxu0
        %v792 = vadd.f32 %v626, %v791
        %v793 = vpop.f32.mrb[0].mxu0
        %v794 = vadd.f32 %v628, %v793
        %795 = vdwg.mxu0
        %v796 = vsel %vm389, 1, 0
        %v797 = vsel %vm390, 1, 0
        %vm798 = vcmp.eq.s32.totalorder %v796, 1
        %vm799 = vcmp.eq.s32.totalorder %v797, 1
        %vm800 = vmpackc.low %vm799, %vm798
        %v801 = vsel %vm800, 65537, 0
        %v802 = vlaneseq
        %v803 = vshrl.u32 %v802, 7
        %v804 = vsub.s32 0, %v803
        %v805 = vrot.slane %v801, %v804
        %v806 = vlaneseq
        %v807 = vshrl.u32 %v806, 7
        %v808 = vsub.s32 4, %v807
        %v809 = vrot.slane %v801, %v808
        %810 = vrot.lane.b32.xlu0 %v805, 113
        %v811 = vpop.permute.xlu0 %810
        %812 = vrot.lane.b32.xlu0 %v809, 113
        %v813 = vpop.permute.xlu0 %812
        %vm814 = vcmask 924672
        %v815 = vsel %vm814, %v811, %v813
        %vm816 = vcmp.ne.s16.totalorder %v811, 0
        %vm817 = vcmp.ne.s16.totalorder %v815, 0
        %vm818 = vcmp.ne.s16.totalorder %v813, 0
        %v819 = vsel %vm816, %v391, 0
        %v820 = vsel %vm817, %v392, 0
        %v821 = vsel %vm818, %v393, 0
        %v822 = vsel %vm816, %v394, 0
        %v823 = vsel %vm817, %v395, 0
        %v824 = vsel %vm818, %v396, 0
        %v825 = vsel %vm816, %v397, 0
        %v826 = vsel %vm817, %v398, 0
        %v827 = vsel %vm818, %v399, 0
        %v828 = vsel %vm816, %v400, 0
        %v829 = vsel %vm817, %v401, 0
        %v830 = vsel %vm818, %v402, 0
        %v831 = vsel %vm816, %v403, 0
        %v832 = vsel %vm817, %v404, 0
        %v833 = vsel %vm818, %v405, 0
        %v834 = vsel %vm816, %v406, 0
        %v835 = vsel %vm817, %v407, 0
        %v836 = vsel %vm818, %v408, 0
        %s837 = scalar_lea.vmem [#allocation7], 48
        %v838 = vld [vmem:[%s837] sm:$0xf]
        %v839 = vld [vmem:[%s837 + $0x4] sm:$0xf]
        %v840 = vld [vmem:[%s837 + $0x8] sm:$0xf]
        %v841 = vld [vmem:[%s837 + $0xc] sm:$0xf]
        %v842 = vld [vmem:[%s837 + $0x10] sm:$0xf]
        %v843 = vld [vmem:[%s837 + $0x14] sm:$0xf]
        %v850 = vunpack.c.l.b16 %v838
        %v851 = vunpack.c.l.b16 %v839
        %v852 = vunpack.c.l.b16 %v840
        %v853 = vunpack.c.l.b16 %v841
        %v854 = vunpack.c.l.b16 %v842
        %v855 = vunpack.c.l.b16 %v843
        %v856 = vpack.c.b16 %v851, %v850
        %v857 = vpack.c.b16 %v853, %v852
        %v858 = vpack.c.b16 %v855, %v854
        %877 = vrot.lane.b32.xlu0 %v819, 15
        %v878 = vpop.permute.xlu0 %877
        %879 = vrot.lane.b32.xlu0 %v820, 15
        %v880 = vpop.permute.xlu0 %879
        %881 = vrot.lane.b32.xlu0 %v821, 15
        %v882 = vpop.permute.xlu0 %881
        %883 = vrot.lane.b32.xlu0 %v822, 15
        %v884 = vpop.permute.xlu0 %883
        %885 = vrot.lane.b32.xlu0 %v823, 15
        %v886 = vpop.permute.xlu0 %885
        %887 = vrot.lane.b32.xlu0 %v824, 15
        %v888 = vpop.permute.xlu0 %887
        %889 = vrot.lane.b32.xlu0 %v825, 15
        %v890 = vpop.permute.xlu0 %889
        %891 = vrot.lane.b32.xlu0 %v826, 15
        %v892 = vpop.permute.xlu0 %891
        %893 = vrot.lane.b32.xlu0 %v827, 15
        %v894 = vpop.permute.xlu0 %893
        %895 = vrot.lane.b32.xlu0 %v828, 15
        %v896 = vpop.permute.xlu0 %895
        %897 = vrot.lane.b32.xlu0 %v829, 15
        %v898 = vpop.permute.xlu0 %897
        %899 = vrot.lane.b32.xlu0 %v830, 15
        %v900 = vpop.permute.xlu0 %899
        %901 = vrot.lane.b32.xlu0 %v831, 15
        %v902 = vpop.permute.xlu0 %901
        %903 = vrot.lane.b32.xlu0 %v832, 15
        %v904 = vpop.permute.xlu0 %903
        %905 = vrot.lane.b32.xlu0 %v833, 15
        %v906 = vpop.permute.xlu0 %905
        %907 = vrot.lane.b32.xlu0 %v834, 15
        %v908 = vpop.permute.xlu0 %907
        %909 = vrot.lane.b32.xlu0 %v835, 15
        %v910 = vpop.permute.xlu0 %909
        %911 = vrot.lane.b32.xlu0 %v836, 15
        %v912 = vpop.permute.xlu0 %911
        %vm913 = vcmask 121856
        %v914 = vsel %vm913, %v878, %v880
        %v915 = vsel %vm913, %v880, %v882
        %v916 = vsel %vm913, %v884, %v886
        %v917 = vsel %vm913, %v886, %v888
        %v918 = vsel %vm913, %v890, %v892
        %v919 = vsel %vm913, %v892, %v894
        %v920 = vsel %vm913, %v896, %v898
        %v921 = vsel %vm913, %v898, %v900
        %v922 = vsel %vm913, %v902, %v904
        %v923 = vsel %vm913, %v904, %v906
        %v924 = vsel %vm913, %v908, %v910
        %v925 = vsel %vm913, %v910, %v912
        %v939 = vsel %vm557, %v856, 0
        %v942 = vsel %vm557, %v857, 0
        %v945 = vsel %vm557, %v858, 0
        %947 = vmatprep.subr.bf16.mxu0 %v915
        %948 = vmatpush1.bf16.msra.mxu0 %v914
        %949 = vmatprep.subr.bf16.mxu0 %v917
        %950 = vmatpush1.bf16.msra.mxu0 %v916
        %951 = vmatprep.subr.bf16.mxu0 %v919
        %952 = vmatpush1.bf16.msra.mxu0 %v918
        %953 = vmatprep.subr.bf16.mxu0 %v921
        %954 = vmatpush1.bf16.msra.mxu0 %v920
        %955 = vmatprep.subr.bf16.mxu0 %v923
        %956 = vmatpush1.bf16.msra.mxu0 %v922
        %957 = vmatprep.subr.bf16.mxu0 %v925
        %958 = vmatpush1.bf16.msra.mxu0 %v924
        %959 = vmatprep.subr.bf16.mxu0 0
        %960 = vmatpush1.bf16.msra.mxu0 0
        %961 = vmatprep.subr.bf16.mxu0 0
        %962 = vmatpush1.bf16.msra.mxu0 0
        %963 = vmatprep.subr.bf16.mxu0 0
        %964 = vmatpush1.bf16.msra.mxu0 0
        %965 = vmatprep.subr.bf16.mxu0 0
        %966 = vmatpush1.bf16.msra.mxu0 0
        %967 = vmatprep.subr.bf16.mxu0 0
        %968 = vmatpush1.bf16.msra.mxu0 0
        %969 = vmatprep.subr.bf16.mxu0 0
        %970 = vmatpush1.bf16.msra.mxu0 0
        %971 = vmatprep.subr.bf16.mxu0 0
        %972 = vmatpush1.bf16.msra.mxu0 0
        %973 = vmatprep.subr.bf16.mxu0 0
        %974 = vmatpush1.bf16.msra.mxu0 0
        %975 = vmatprep.subr.bf16.mxu0 0
        %976 = vmatpush1.bf16.msra.mxu0 0
        %977 = vmatprep.subr.bf16.mxu0 0
        %978 = vmatpush1.bf16.msra.mxu0 0
        %979 = vmatprep.mubr.bf16.mxu0 0
        %980 = vmatmul.mubr.bf16.gmra.mrb[0].mxu0 %v939
        %v981 = vpop.f32.mrb[0].mxu0
        %v982 = vadd.f32 0.0, %v981
        %v983 = vpop.f32.mrb[0].mxu0
        %v984 = vadd.f32 0.0, %v983
        %v985 = vpop.f32.mrb[0].mxu0
        %v986 = vadd.f32 0.0, %v985
        %v987 = vpop.f32.mrb[0].mxu0
        %v988 = vadd.f32 0.0, %v987
        %989 = vmatprep.mubr.bf16.mxu0 0
        %990 = vmatmul.mubr.bf16.gmra.mrb[0].mxu0 %v942
        %v991 = vpop.f32.mrb[0].mxu0
        %v992 = vadd.f32 0.0, %v991
        %v993 = vpop.f32.mrb[0].mxu0
        %v994 = vadd.f32 0.0, %v993
        %v995 = vpop.f32.mrb[0].mxu0
        %v996 = vadd.f32 0.0, %v995
        %v997 = vpop.f32.mrb[0].mxu0
        %v998 = vadd.f32 0.0, %v997
        %999 = vmatprep.mubr.bf16.mxu0 0
        %1000 = vmatmul.mubr.bf16.gmra.mrb[0].mxu0 %v945
        %v1001 = vpop.f32.mrb[0].mxu0
        %v1002 = vadd.f32 0.0, %v1001
        %v1003 = vpop.f32.mrb[0].mxu0
        %v1004 = vadd.f32 0.0, %v1003
        %v1005 = vpop.f32.mrb[0].mxu0
        %v1006 = vadd.f32 0.0, %v1005
        %v1007 = vpop.f32.mrb[0].mxu0
        %v1008 = vadd.f32 0.0, %v1007
        %1009 = vdwg.mxu0
        %v1010 = vadd.f32 %v768, %v982
        %v1011 = vadd.f32 %v770, %v984
        %v1012 = vadd.f32 %v772, %v986
        %v1013 = vadd.f32 %v774, %v988
        %v1014 = vadd.f32 %v778, %v992
        %v1015 = vadd.f32 %v780, %v994
        %v1016 = vadd.f32 %v782, %v996
        %v1017 = vadd.f32 %v784, %v998
        %v1018 = vadd.f32 %v788, %v1002
        %v1019 = vadd.f32 %v790, %v1004
        %v1020 = vadd.f32 %v792, %v1006
        %v1021 = vadd.f32 %v794, %v1008
        %1022 = vrot.lane.b32.xlu0 %v418, 127
        %v1023 = vpop.permute.xlu0 %1022
        %1024 = vrot.lane.b32.xlu0 %v422, 127
        %v1025 = vpop.permute.xlu0 %1024
        %vm1026 = vcmask 1039360
        %v1027 = vsel %vm1026, %v1023, %v1025
        %vm1028 = vcmp.ne.s16.totalorder %v1023, 0
        %vm1029 = vcmp.ne.s16.totalorder %v1027, 0
        %vm1030 = vcmp.ne.s16.totalorder %v1025, 0
        %v1031 = vsel %vm1028, %v391, 0
        %v1032 = vsel %vm1029, %v392, 0
        %v1033 = vsel %vm1030, %v393, 0
        %v1034 = vsel %vm1028, %v394, 0
        %v1035 = vsel %vm1029, %v395, 0
        %v1036 = vsel %vm1030, %v396, 0
        %v1037 = vsel %vm1028, %v397, 0
        %v1038 = vsel %vm1029, %v398, 0
        %v1039 = vsel %vm1030, %v399, 0
        %v1040 = vsel %vm1028, %v400, 0
        %v1041 = vsel %vm1029, %v401, 0
        %v1042 = vsel %vm1030, %v402, 0
        %v1043 = vsel %vm1028, %v403, 0
        %v1044 = vsel %vm1029, %v404, 0
        %v1045 = vsel %vm1030, %v405, 0
        %v1046 = vsel %vm1028, %v406, 0
        %v1047 = vsel %vm1029, %v407, 0
        %v1048 = vsel %vm1030, %v408, 0
        %s1049 = scalar_lea.vmem [#allocation7], 72
        %v1050 = vld [vmem:[%s1049] sm:$0xf]
        %v1051 = vld [vmem:[%s1049 + $0x4] sm:$0xf]
        %v1052 = vld [vmem:[%s1049 + $0x8] sm:$0xf]
        %v1053 = vld [vmem:[%s1049 + $0xc] sm:$0xf]
        %v1054 = vld [vmem:[%s1049 + $0x10] sm:$0xf]
        %v1055 = vld [vmem:[%s1049 + $0x14] sm:$0xf]
        %v1062 = vunpack.c.l.b16 %v1050
        %v1063 = vunpack.c.l.b16 %v1051
        %v1064 = vunpack.c.l.b16 %v1052
        %v1065 = vunpack.c.l.b16 %v1053
        %v1066 = vunpack.c.l.b16 %v1054
        %v1067 = vunpack.c.l.b16 %v1055
        %v1068 = vpack.c.b16 %v1063, %v1062
        %v1069 = vpack.c.b16 %v1065, %v1064
        %v1070 = vpack.c.b16 %v1067, %v1066
        %1089 = vrot.lane.b32.xlu0 %v1031, 1
        %v1090 = vpop.permute.xlu0 %1089
        %1091 = vrot.lane.b32.xlu0 %v1032, 1
        %v1092 = vpop.permute.xlu0 %1091
        %1093 = vrot.lane.b32.xlu0 %v1033, 1
        %v1094 = vpop.permute.xlu0 %1093
        %1095 = vrot.lane.b32.xlu0 %v1034, 1
        %v1096 = vpop.permute.xlu0 %1095
        %1097 = vrot.lane.b32.xlu0 %v1035, 1
        %v1098 = vpop.permute.xlu0 %1097
        %1099 = vrot.lane.b32.xlu0 %v1036, 1
        %v1100 = vpop.permute.xlu0 %1099
        %1101 = vrot.lane.b32.xlu0 %v1037, 1
        %v1102 = vpop.permute.xlu0 %1101
        %1103 = vrot.lane.b32.xlu0 %v1038, 1
        %v1104 = vpop.permute.xlu0 %1103
        %1105 = vrot.lane.b32.xlu0 %v1039, 1
        %v1106 = vpop.permute.xlu0 %1105
        %1107 = vrot.lane.b32.xlu0 %v1040, 1
        %v1108 = vpop.permute.xlu0 %1107
        %1109 = vrot.lane.b32.xlu0 %v1041, 1
        %v1110 = vpop.permute.xlu0 %1109
        %1111 = vrot.lane.b32.xlu0 %v1042, 1
        %v1112 = vpop.permute.xlu0 %1111
        %1113 = vrot.lane.b32.xlu0 %v1043, 1
        %v1114 = vpop.permute.xlu0 %1113
        %1115 = vrot.lane.b32.xlu0 %v1044, 1
        %v1116 = vpop.permute.xlu0 %1115
        %1117 = vrot.lane.b32.xlu0 %v1045, 1
        %v1118 = vpop.permute.xlu0 %1117
        %1119 = vrot.lane.b32.xlu0 %v1046, 1
        %v1120 = vpop.permute.xlu0 %1119
        %1121 = vrot.lane.b32.xlu0 %v1047, 1
        %v1122 = vpop.permute.xlu0 %1121
        %1123 = vrot.lane.b32.xlu0 %v1048, 1
        %v1124 = vpop.permute.xlu0 %1123
        %vm1125 = vcmask 7168
        %v1126 = vsel %vm1125, %v1090, %v1092
        %v1127 = vsel %vm1125, %v1092, %v1094
        %v1128 = vsel %vm1125, %v1096, %v1098
        %v1129 = vsel %vm1125, %v1098, %v1100
        %v1130 = vsel %vm1125, %v1102, %v1104
        %v1131 = vsel %vm1125, %v1104, %v1106
        %v1132 = vsel %vm1125, %v1108, %v1110
        %v1133 = vsel %vm1125, %v1110, %v1112
        %v1134 = vsel %vm1125, %v1114, %v1116
        %v1135 = vsel %vm1125, %v1116, %v1118
        %v1136 = vsel %vm1125, %v1120, %v1122
        %v1137 = vsel %vm1125, %v1122, %v1124
        %v1151 = vsel %vm557, %v1068, 0
        %v1154 = vsel %vm557, %v1069, 0
        %v1157 = vsel %vm557, %v1070, 0
        %1159 = vmatprep.subr.bf16.mxu0 %v1127
        %1160 = vmatpush1.bf16.msra.mxu0 %v1126
        %1161 = vmatprep.subr.bf16.mxu0 %v1129
        %1162 = vmatpush1.bf16.msra.mxu0 %v1128
        %1163 = vmatprep.subr.bf16.mxu0 %v1131
        %1164 = vmatpush1.bf16.msra.mxu0 %v1130
        %1165 = vmatprep.subr.bf16.mxu0 %v1133
        %1166 = vmatpush1.bf16.msra.mxu0 %v1132
        %1167 = vmatprep.subr.bf16.mxu0 %v1135
        %1168 = vmatpush1.bf16.msra.mxu0 %v1134
        %1169 = vmatprep.subr.bf16.mxu0 %v1137
        %1170 = vmatpush1.bf16.msra.mxu0 %v1136
        %1171 = vmatprep.subr.bf16.mxu0 0
        %1172 = vmatpush1.bf16.msra.mxu0 0
        %1173 = vmatprep.subr.bf16.mxu0 0
        %1174 = vmatpush1.bf16.msra.mxu0 0
        %1175 = vmatprep.subr.bf16.mxu0 0
        %1176 = vmatpush1.bf16.msra.mxu0 0
        %1177 = vmatprep.subr.bf16.mxu0 0
        %1178 = vmatpush1.bf16.msra.mxu0 0
        %1179 = vmatprep.subr.bf16.mxu0 0
        %1180 = vmatpush1.bf16.msra.mxu0 0
        %1181 = vmatprep.subr.bf16.mxu0 0
        %1182 = vmatpush1.bf16.msra.mxu0 0
        %1183 = vmatprep.subr.bf16.mxu0 0
        %1184 = vmatpush1.bf16.msra.mxu0 0
        %1185 = vmatprep.subr.bf16.mxu0 0
        %1186 = vmatpush1.bf16.msra.mxu0 0
        %1187 = vmatprep.subr.bf16.mxu0 0
        %1188 = vmatpush1.bf16.msra.mxu0 0
        %1189 = vmatprep.subr.bf16.mxu0 0
        %1190 = vmatpush1.bf16.msra.mxu0 0
        %1191 = vmatprep.mubr.bf16.mxu0 0
        %1192 = vmatmul.mubr.bf16.gmra.mrb[0].mxu0 %v1151
        %v1193 = vpop.f32.mrb[0].mxu0
        %v1194 = vadd.f32 0.0, %v1193
        %v1195 = vpop.f32.mrb[0].mxu0
        %v1196 = vadd.f32 0.0, %v1195
        %v1197 = vpop.f32.mrb[0].mxu0
        %v1198 = vadd.f32 0.0, %v1197
        %v1199 = vpop.f32.mrb[0].mxu0
        %v1200 = vadd.f32 0.0, %v1199
        %1201 = vmatprep.mubr.bf16.mxu0 0
        %1202 = vmatmul.mubr.bf16.gmra.mrb[0].mxu0 %v1154
        %v1203 = vpop.f32.mrb[0].mxu0
        %v1204 = vadd.f32 0.0, %v1203
        %v1205 = vpop.f32.mrb[0].mxu0
        %v1206 = vadd.f32 0.0, %v1205
        %v1207 = vpop.f32.mrb[0].mxu0
        %v1208 = vadd.f32 0.0, %v1207
        %v1209 = vpop.f32.mrb[0].mxu0
        %v1210 = vadd.f32 0.0, %v1209
        %1211 = vmatprep.mubr.bf16.mxu0 0
        %1212 = vmatmul.mubr.bf16.gmra.mrb[0].mxu0 %v1157
        %v1213 = vpop.f32.mrb[0].mxu0
        %v1214 = vadd.f32 0.0, %v1213
        %v1215 = vpop.f32.mrb[0].mxu0
        %v1216 = vadd.f32 0.0, %v1215
        %v1217 = vpop.f32.mrb[0].mxu0
        %v1218 = vadd.f32 0.0, %v1217
        %v1219 = vpop.f32.mrb[0].mxu0
        %v1220 = vadd.f32 0.0, %v1219
        %1221 = vdwg.mxu0
        %v1222 = vadd.f32 %v1010, %v1194
        %v1223 = vadd.f32 %v1011, %v1196
        %v1224 = vadd.f32 %v1012, %v1198
        %v1225 = vadd.f32 %v1013, %v1200
        %v1226 = vadd.f32 %v1014, %v1204
        %v1227 = vadd.f32 %v1015, %v1206
        %v1228 = vadd.f32 %v1016, %v1208
        %v1229 = vadd.f32 %v1017, %v1210
        %v1230 = vadd.f32 %v1018, %v1214
        %v1231 = vadd.f32 %v1019, %v1216
        %v1232 = vadd.f32 %v1020, %v1218
        %v1233 = vadd.f32 %v1021, %v1220
        %s1234 = scalar_lea.vmem [#allocation7], 96
        %v1235 = vld [vmem:[%s1234] sm:$0xf]
        %v1236 = vld [vmem:[%s1234 + $0x4] sm:$0xf]
        %v1237 = vld [vmem:[%s1234 + $0x8] sm:$0xf]
        %v1238 = vld [vmem:[%s1234 + $0xc] sm:$0xf]
        %v1239 = vld [vmem:[%s1234 + $0x10] sm:$0xf]
        %v1240 = vld [vmem:[%s1234 + $0x14] sm:$0xf]
        %v1247 = vunpack.c.l.b16 %v1235
        %v1248 = vunpack.c.l.b16 %v1236
        %v1249 = vunpack.c.l.b16 %v1237
        %v1250 = vunpack.c.l.b16 %v1238
        %v1251 = vunpack.c.l.b16 %v1239
        %v1252 = vunpack.c.l.b16 %v1240
        %v1253 = vpack.c.b16 %v1248, %v1247
        %v1254 = vpack.c.b16 %v1250, %v1249
        %v1255 = vpack.c.b16 %v1252, %v1251
        %v1257 = vsel %vm557, %v1253, 0
        %v1260 = vsel %vm557, %v1254, 0
        %v1263 = vsel %vm557, %v1255, 0
        %1265 = vmatprep.subr.bf16.mxu0 %v393
        %1266 = vmatpush1.bf16.msra.mxu0 %v392
        %1267 = vmatprep.subr.bf16.mxu0 %v396
        %1268 = vmatpush1.bf16.msra.mxu0 %v395
        %1269 = vmatprep.subr.bf16.mxu0 %v399
        %1270 = vmatpush1.bf16.msra.mxu0 %v398
        %1271 = vmatprep.subr.bf16.mxu0 %v402
        %1272 = vmatpush1.bf16.msra.mxu0 %v401
        %1273 = vmatprep.subr.bf16.mxu0 %v405
        %1274 = vmatpush1.bf16.msra.mxu0 %v404
        %1275 = vmatprep.subr.bf16.mxu0 %v408
        %1276 = vmatpush1.bf16.msra.mxu0 %v407
        %1277 = vmatprep.subr.bf16.mxu0 0
        %1278 = vmatpush1.bf16.msra.mxu0 0
        %1279 = vmatprep.subr.bf16.mxu0 0
        %1280 = vmatpush1.bf16.msra.mxu0 0
        %1281 = vmatprep.subr.bf16.mxu0 0
        %1282 = vmatpush1.bf16.msra.mxu0 0
        %1283 = vmatprep.subr.bf16.mxu0 0
        %1284 = vmatpush1.bf16.msra.mxu0 0
        %1285 = vmatprep.subr.bf16.mxu0 0
        %1286 = vmatpush1.bf16.msra.mxu0 0
        %1287 = vmatprep.subr.bf16.mxu0 0
        %1288 = vmatpush1.bf16.msra.mxu0 0
        %1289 = vmatprep.subr.bf16.mxu0 0
        %1290 = vmatpush1.bf16.msra.mxu0 0
        %1291 = vmatprep.subr.bf16.mxu0 0
        %1292 = vmatpush1.bf16.msra.mxu0 0
        %1293 = vmatprep.subr.bf16.mxu0 0
        %1294 = vmatpush1.bf16.msra.mxu0 0
        %1295 = vmatprep.subr.bf16.mxu0 0
        %1296 = vmatpush1.bf16.msra.mxu0 0
        %1297 = vmatprep.mubr.bf16.mxu0 0
        %1298 = vmatmul.mubr.bf16.gmra.mrb[0].mxu0 %v1257
        %v1299 = vpop.f32.mrb[0].mxu0
        %v1300 = vadd.f32 0.0, %v1299
        %v1301 = vpop.f32.mrb[0].mxu0
        %v1302 = vadd.f32 0.0, %v1301
        %v1303 = vpop.f32.mrb[0].mxu0
        %v1304 = vadd.f32 0.0, %v1303
        %v1305 = vpop.f32.mrb[0].mxu0
        %v1306 = vadd.f32 0.0, %v1305
        %1307 = vmatprep.mubr.bf16.mxu0 0
        %1308 = vmatmul.mubr.bf16.gmra.mrb[0].mxu0 %v1260
        %v1309 = vpop.f32.mrb[0].mxu0
        %v1310 = vadd.f32 0.0, %v1309
        %v1311 = vpop.f32.mrb[0].mxu0
        %v1312 = vadd.f32 0.0, %v1311
        %v1313 = vpop.f32.mrb[0].mxu0
        %v1314 = vadd.f32 0.0, %v1313
        %v1315 = vpop.f32.mrb[0].mxu0
        %v1316 = vadd.f32 0.0, %v1315
        %1317 = vmatprep.mubr.bf16.mxu0 0
        %1318 = vmatmul.mubr.bf16.gmra.mrb[0].mxu0 %v1263
        %v1319 = vpop.f32.mrb[0].mxu0
        %v1320 = vadd.f32 0.0, %v1319
        %v1321 = vpop.f32.mrb[0].mxu0
        %v1322 = vadd.f32 0.0, %v1321
        %v1323 = vpop.f32.mrb[0].mxu0
        %v1324 = vadd.f32 0.0, %v1323
        %v1325 = vpop.f32.mrb[0].mxu0
        %v1326 = vadd.f32 0.0, %v1325
        %1327 = vdwg.mxu0
        %v1328 = vadd.f32 %v1222, %v1300
        %v1329 = vadd.f32 %v1223, %v1302
        %v1330 = vadd.f32 %v1224, %v1304
        %v1331 = vadd.f32 %v1225, %v1306
        %v1332 = vadd.f32 %v1226, %v1310
        %v1333 = vadd.f32 %v1227, %v1312
        %v1334 = vadd.f32 %v1228, %v1314
        %v1335 = vadd.f32 %v1229, %v1316
        %v1336 = vadd.f32 %v1230, %v1320
        %v1337 = vadd.f32 %v1231, %v1322
        %v1338 = vadd.f32 %v1232, %v1324
        %v1339 = vadd.f32 %v1233, %v1326
        %v1340 = vld [vmem:[#allocation2 + $0x8] sm:$0xff]
        %v1341 = vld [vmem:[#allocation2 + $0x10] sm:$0xff]
        %v1342 = vld [vmem:[#allocation2 + $0x18] sm:$0xff]
        %v1343 = vld [vmem:[#allocation2 + $0x28] sm:$0xff]
        %v1344 = vld [vmem:[#allocation2 + $0x30] sm:$0xff]
        %v1345 = vld [vmem:[#allocation2 + $0x38] sm:$0xff]
        %v1346 = vld [vmem:[#allocation2 + $0x48] sm:$0xff]
        %v1347 = vld [vmem:[#allocation2 + $0x50] sm:$0xff]
        %v1348 = vld [vmem:[#allocation2 + $0x58] sm:$0xff]
        %v1349 = vld [vmem:[#allocation2 + $0x68] sm:$0xff]
        %v1350 = vld [vmem:[#allocation2 + $0x70] sm:$0xff]
        %v1351 = vld [vmem:[#allocation2 + $0x78] sm:$0xff]
        %v1352 = vld [vmem:[#allocation2 + $0x88] sm:$0xff]
        %v1353 = vld [vmem:[#allocation2 + $0x90] sm:$0xff]
        %v1354 = vld [vmem:[#allocation2 + $0x98] sm:$0xff]
        %v1355 = vld [vmem:[#allocation2 + $0xa8] sm:$0xff]
        %v1356 = vld [vmem:[#allocation2 + $0xb0] sm:$0xff]
        %v1357 = vld [vmem:[#allocation2 + $0xb8] sm:$0xff]
        %1358 = vrot.lane.b32.xlu0 %v805, 1
        %v1359 = vpop.permute.xlu0 %1358
        %1360 = vrot.lane.b32.xlu0 %v809, 1
        %v1361 = vpop.permute.xlu0 %1360
        %v1362 = vsel %vm1125, %v1359, %v1361
        %vm1363 = vcmp.ne.s16.totalorder %v1359, 0
        %vm1364 = vcmp.ne.s16.totalorder %v1362, 0
        %vm1365 = vcmp.ne.s16.totalorder %v1361, 0
        %v1366 = vsel %vm1363, %v1340, 0
        %v1367 = vsel %vm1364, %v1341, 0
        %v1368 = vsel %vm1365, %v1342, 0
        %v1369 = vsel %vm1363, %v1343, 0
        %v1370 = vsel %vm1364, %v1344, 0
        %v1371 = vsel %vm1365, %v1345, 0
        %v1372 = vsel %vm1363, %v1346, 0
        %v1373 = vsel %vm1364, %v1347, 0
        %v1374 = vsel %vm1365, %v1348, 0
        %v1375 = vsel %vm1363, %v1349, 0
        %v1376 = vsel %vm1364, %v1350, 0
        %v1377 = vsel %vm1365, %v1351, 0
        %v1378 = vsel %vm1363, %v1352, 0
        %v1379 = vsel %vm1364, %v1353, 0
        %v1380 = vsel %vm1365, %v1354, 0
        %v1381 = vsel %vm1363, %v1355, 0
        %v1382 = vsel %vm1364, %v1356, 0
        %v1383 = vsel %vm1365, %v1357, 0
        %s1384 = scalar_lea.vmem [#allocation7], 120
        %v1385 = vld [vmem:[%s1384] sm:$0xf]
        %v1386 = vld [vmem:[%s1384 + $0x4] sm:$0xf]
        %v1387 = vld [vmem:[%s1384 + $0x8] sm:$0xf]
        %v1388 = vld [vmem:[%s1384 + $0xc] sm:$0xf]
        %v1389 = vld [vmem:[%s1384 + $0x10] sm:$0xf]
        %v1390 = vld [vmem:[%s1384 + $0x14] sm:$0xf]
        %v1397 = vunpack.c.l.b16 %v1385
        %v1398 = vunpack.c.l.b16 %v1386
        %v1399 = vunpack.c.l.b16 %v1387
        %v1400 = vunpack.c.l.b16 %v1388
        %v1401 = vunpack.c.l.b16 %v1389
        %v1402 = vunpack.c.l.b16 %v1390
        %v1403 = vpack.c.b16 %v1398, %v1397
        %v1404 = vpack.c.b16 %v1400, %v1399
        %v1405 = vpack.c.b16 %v1402, %v1401
        %1424 = vrot.lane.b32.xlu0 %v1366, 127
        %v1425 = vpop.permute.xlu0 %1424
        %1426 = vrot.lane.b32.xlu0 %v1367, 127
        %v1427 = vpop.permute.xlu0 %1426
        %1428 = vrot.lane.b32.xlu0 %v1368, 127
        %v1429 = vpop.permute.xlu0 %1428
        %1430 = vrot.lane.b32.xlu0 %v1369, 127
        %v1431 = vpop.permute.xlu0 %1430
        %1432 = vrot.lane.b32.xlu0 %v1370, 127
        %v1433 = vpop.permute.xlu0 %1432
        %1434 = vrot.lane.b32.xlu0 %v1371, 127
        %v1435 = vpop.permute.xlu0 %1434
        %1436 = vrot.lane.b32.xlu0 %v1372, 127
        %v1437 = vpop.permute.xlu0 %1436
        %1438 = vrot.lane.b32.xlu0 %v1373, 127
        %v1439 = vpop.permute.xlu0 %1438
        %1440 = vrot.lane.b32.xlu0 %v1374, 127
        %v1441 = vpop.permute.xlu0 %1440
        %1442 = vrot.lane.b32.xlu0 %v1375, 127
        %v1443 = vpop.permute.xlu0 %1442
        %1444 = vrot.lane.b32.xlu0 %v1376, 127
        %v1445 = vpop.permute.xlu0 %1444
        %1446 = vrot.lane.b32.xlu0 %v1377, 127
        %v1447 = vpop.permute.xlu0 %1446
        %1448 = vrot.lane.b32.xlu0 %v1378, 127
        %v1449 = vpop.permute.xlu0 %1448
        %1450 = vrot.lane.b32.xlu0 %v1379, 127
        %v1451 = vpop.permute.xlu0 %1450
        %1452 = vrot.lane.b32.xlu0 %v1380, 127
        %v1453 = vpop.permute.xlu0 %1452
        %1454 = vrot.lane.b32.xlu0 %v1381, 127
        %v1455 = vpop.permute.xlu0 %1454
        %1456 = vrot.lane.b32.xlu0 %v1382, 127
        %v1457 = vpop.permute.xlu0 %1456
        %1458 = vrot.lane.b32.xlu0 %v1383, 127
        %v1459 = vpop.permute.xlu0 %1458
        %v1460 = vsel %vm1026, %v1425, %v1427
        %v1461 = vsel %vm1026, %v1427, %v1429
        %v1462 = vsel %vm1026, %v1431, %v1433
        %v1463 = vsel %vm1026, %v1433, %v1435
        %v1464 = vsel %vm1026, %v1437, %v1439
        %v1465 = vsel %vm1026, %v1439, %v1441
        %v1466 = vsel %vm1026, %v1443, %v1445
        %v1467 = vsel %vm1026, %v1445, %v1447
        %v1468 = vsel %vm1026, %v1449, %v1451
        %v1469 = vsel %vm1026, %v1451, %v1453
        %v1470 = vsel %vm1026, %v1455, %v1457
        %v1471 = vsel %vm1026, %v1457, %v1459
        %v1485 = vsel %vm557, %v1403, 0
        %v1488 = vsel %vm557, %v1404, 0
        %v1491 = vsel %vm557, %v1405, 0
        %1493 = vmatprep.subr.bf16.mxu0 %v1461
        %1494 = vmatpush1.bf16.msra.mxu0 %v1460
        %1495 = vmatprep.subr.bf16.mxu0 %v1463
        %1496 = vmatpush1.bf16.msra.mxu0 %v1462
        %1497 = vmatprep.subr.bf16.mxu0 %v1465
        %1498 = vmatpush1.bf16.msra.mxu0 %v1464
        %1499 = vmatprep.subr.bf16.mxu0 %v1467
        %1500 = vmatpush1.bf16.msra.mxu0 %v1466
        %1501 = vmatprep.subr.bf16.mxu0 %v1469
        %1502 = vmatpush1.bf16.msra.mxu0 %v1468
        %1503 = vmatprep.subr.bf16.mxu0 %v1471
        %1504 = vmatpush1.bf16.msra.mxu0 %v1470
        %1505 = vmatprep.subr.bf16.mxu0 0
        %1506 = vmatpush1.bf16.msra.mxu0 0
        %1507 = vmatprep.subr.bf16.mxu0 0
        %1508 = vmatpush1.bf16.msra.mxu0 0
        %1509 = vmatprep.subr.bf16.mxu0 0
        %1510 = vmatpush1.bf16.msra.mxu0 0
        %1511 = vmatprep.subr.bf16.mxu0 0
        %1512 = vmatpush1.bf16.msra.mxu0 0
        %1513 = vmatprep.subr.bf16.mxu0 0
        %1514 = vmatpush1.bf16.msra.mxu0 0
        %1515 = vmatprep.subr.bf16.mxu0 0
        %1516 = vmatpush1.bf16.msra.mxu0 0
        %1517 = vmatprep.subr.bf16.mxu0 0
        %1518 = vmatpush1.bf16.msra.mxu0 0
        %1519 = vmatprep.subr.bf16.mxu0 0
        %1520 = vmatpush1.bf16.msra.mxu0 0
        %1521 = vmatprep.subr.bf16.mxu0 0
        %1522 = vmatpush1.bf16.msra.mxu0 0
        %1523 = vmatprep.subr.bf16.mxu0 0
        %1524 = vmatpush1.bf16.msra.mxu0 0
        %1525 = vmatprep.mubr.bf16.mxu0 0
        %1526 = vmatmul.mubr.bf16.gmra.mrb[0].mxu0 %v1485
        %v1527 = vpop.f32.mrb[0].mxu0
        %v1528 = vadd.f32 0.0, %v1527
        %v1529 = vpop.f32.mrb[0].mxu0
        %v1530 = vadd.f32 0.0, %v1529
        %v1531 = vpop.f32.mrb[0].mxu0
        %v1532 = vadd.f32 0.0, %v1531
        %v1533 = vpop.f32.mrb[0].mxu0
        %v1534 = vadd.f32 0.0, %v1533
        %1535 = vmatprep.mubr.bf16.mxu0 0
        %1536 = vmatmul.mubr.bf16.gmra.mrb[0].mxu0 %v1488
        %v1537 = vpop.f32.mrb[0].mxu0
        %v1538 = vadd.f32 0.0, %v1537
        %v1539 = vpop.f32.mrb[0].mxu0
        %v1540 = vadd.f32 0.0, %v1539
        %v1541 = vpop.f32.mrb[0].mxu0
        %v1542 = vadd.f32 0.0, %v1541
        %v1543 = vpop.f32.mrb[0].mxu0
        %v1544 = vadd.f32 0.0, %v1543
        %1545 = vmatprep.mubr.bf16.mxu0 0
        %1546 = vmatmul.mubr.bf16.gmra.mrb[0].mxu0 %v1491
        %v1547 = vpop.f32.mrb[0].mxu0
        %v1548 = vadd.f32 0.0, %v1547
        %v1549 = vpop.f32.mrb[0].mxu0
        %v1550 = vadd.f32 0.0, %v1549
        %v1551 = vpop.f32.mrb[0].mxu0
        %v1552 = vadd.f32 0.0, %v1551
        %v1553 = vpop.f32.mrb[0].mxu0
        %v1554 = vadd.f32 0.0, %v1553
        %1555 = vdwg.mxu0
        %v1556 = vadd.f32 %v1328, %v1528
        %v1557 = vadd.f32 %v1329, %v1530
        %v1558 = vadd.f32 %v1330, %v1532
        %v1559 = vadd.f32 %v1331, %v1534
        %v1560 = vadd.f32 %v1332, %v1538
        %v1561 = vadd.f32 %v1333, %v1540
        %v1562 = vadd.f32 %v1334, %v1542
        %v1563 = vadd.f32 %v1335, %v1544
        %v1564 = vadd.f32 %v1336, %v1548
        %v1565 = vadd.f32 %v1337, %v1550
        %v1566 = vadd.f32 %v1338, %v1552
        %v1567 = vadd.f32 %v1339, %v1554
        %1568 = vrot.lane.b32.xlu0 %v418, 15
        %v1569 = vpop.permute.xlu0 %1568
        %1570 = vrot.lane.b32.xlu0 %v422, 15
        %v1571 = vpop.permute.xlu0 %1570
        %v1572 = vsel %vm913, %v1569, %v1571
        %vm1573 = vcmp.ne.s16.totalorder %v1569, 0
        %vm1574 = vcmp.ne.s16.totalorder %v1572, 0
        %vm1575 = vcmp.ne.s16.totalorder %v1571, 0
        %v1576 = vsel %vm1573, %v1340, 0
        %v1577 = vsel %vm1574, %v1341, 0
        %v1578 = vsel %vm1575, %v1342, 0
        %v1579 = vsel %vm1573, %v1343, 0
        %v1580 = vsel %vm1574, %v1344, 0
        %v1581 = vsel %vm1575, %v1345, 0
        %v1582 = vsel %vm1573, %v1346, 0
        %v1583 = vsel %vm1574, %v1347, 0
        %v1584 = vsel %vm1575, %v1348, 0
        %v1585 = vsel %vm1573, %v1349, 0
        %v1586 = vsel %vm1574, %v1350, 0
        %v1587 = vsel %vm1575, %v1351, 0
        %v1588 = vsel %vm1573, %v1352, 0
        %v1589 = vsel %vm1574, %v1353, 0
        %v1590 = vsel %vm1575, %v1354, 0
        %v1591 = vsel %vm1573, %v1355, 0
        %v1592 = vsel %vm1574, %v1356, 0
        %v1593 = vsel %vm1575, %v1357, 0
        %s1594 = scalar_lea.vmem [#allocation7], 144
        %v1595 = vld [vmem:[%s1594] sm:$0xf]
        %v1596 = vld [vmem:[%s1594 + $0x4] sm:$0xf]
        %v1597 = vld [vmem:[%s1594 + $0x8] sm:$0xf]
        %v1598 = vld [vmem:[%s1594 + $0xc] sm:$0xf]
        %v1599 = vld [vmem:[%s1594 + $0x10] sm:$0xf]
        %v1600 = vld [vmem:[%s1594 + $0x14] sm:$0xf]
        %v1607 = vunpack.c.l.b16 %v1595
        %v1608 = vunpack.c.l.b16 %v1596
        %v1609 = vunpack.c.l.b16 %v1597
        %v1610 = vunpack.c.l.b16 %v1598
        %v1611 = vunpack.c.l.b16 %v1599
        %v1612 = vunpack.c.l.b16 %v1600
        %v1613 = vpack.c.b16 %v1608, %v1607
        %v1614 = vpack.c.b16 %v1610, %v1609
        %v1615 = vpack.c.b16 %v1612, %v1611
        %1634 = vrot.lane.b32.xlu0 %v1576, 113
        %v1635 = vpop.permute.xlu0 %1634
        %1636 = vrot.lane.b32.xlu0 %v1577, 113
        %v1637 = vpop.permute.xlu0 %1636
        %1638 = vrot.lane.b32.xlu0 %v1578, 113
        %v1639 = vpop.permute.xlu0 %1638
        %1640 = vrot.lane.b32.xlu0 %v1579, 113
        %v1641 = vpop.permute.xlu0 %1640
        %1642 = vrot.lane.b32.xlu0 %v1580, 113
        %v1643 = vpop.permute.xlu0 %1642
        %1644 = vrot.lane.b32.xlu0 %v1581, 113
        %v1645 = vpop.permute.xlu0 %1644
        %1646 = vrot.lane.b32.xlu0 %v1582, 113
        %v1647 = vpop.permute.xlu0 %1646
        %1648 = vrot.lane.b32.xlu0 %v1583, 113
        %v1649 = vpop.permute.xlu0 %1648
        %1650 = vrot.lane.b32.xlu0 %v1584, 113
        %v1651 = vpop.permute.xlu0 %1650
        %1652 = vrot.lane.b32.xlu0 %v1585, 113
        %v1653 = vpop.permute.xlu0 %1652
        %1654 = vrot.lane.b32.xlu0 %v1586, 113
        %v1655 = vpop.permute.xlu0 %1654
        %1656 = vrot.lane.b32.xlu0 %v1587, 113
        %v1657 = vpop.permute.xlu0 %1656
        %1658 = vrot.lane.b32.xlu0 %v1588, 113
        %v1659 = vpop.permute.xlu0 %1658
        %1660 = vrot.lane.b32.xlu0 %v1589, 113
        %v1661 = vpop.permute.xlu0 %1660
        %1662 = vrot.lane.b32.xlu0 %v1590, 113
        %v1663 = vpop.permute.xlu0 %1662
        %1664 = vrot.lane.b32.xlu0 %v1591, 113
        %v1665 = vpop.permute.xlu0 %1664
        %1666 = vrot.lane.b32.xlu0 %v1592, 113
        %v1667 = vpop.permute.xlu0 %1666
        %1668 = vrot.lane.b32.xlu0 %v1593, 113
        %v1669 = vpop.permute.xlu0 %1668
        %v1670 = vsel %vm814, %v1635, %v1637
        %v1671 = vsel %vm814, %v1637, %v1639
        %v1672 = vsel %vm814, %v1641, %v1643
        %v1673 = vsel %vm814, %v1643, %v1645
        %v1674 = vsel %vm814, %v1647, %v1649
        %v1675 = vsel %vm814, %v1649, %v1651
        %v1676 = vsel %vm814, %v1653, %v1655
        %v1677 = vsel %vm814, %v1655, %v1657
        %v1678 = vsel %vm814, %v1659, %v1661
        %v1679 = vsel %vm814, %v1661, %v1663
        %v1680 = vsel %vm814, %v1665, %v1667
        %v1681 = vsel %vm814, %v1667, %v1669
        %v1695 = vsel %vm557, %v1613, 0
        %v1698 = vsel %vm557, %v1614, 0
        %v1701 = vsel %vm557, %v1615, 0
        %1703 = vmatprep.subr.bf16.mxu0 %v1671
        %1704 = vmatpush1.bf16.msra.mxu0 %v1670
        %1705 = vmatprep.subr.bf16.mxu0 %v1673
        %1706 = vmatpush1.bf16.msra.mxu0 %v1672
        %1707 = vmatprep.subr.bf16.mxu0 %v1675
        %1708 = vmatpush1.bf16.msra.mxu0 %v1674
        %1709 = vmatprep.subr.bf16.mxu0 %v1677
        %1710 = vmatpush1.bf16.msra.mxu0 %v1676
        %1711 = vmatprep.subr.bf16.mxu0 %v1679
        %1712 = vmatpush1.bf16.msra.mxu0 %v1678
        %1713 = vmatprep.subr.bf16.mxu0 %v1681
        %1714 = vmatpush1.bf16.msra.mxu0 %v1680
        %1715 = vmatprep.subr.bf16.mxu0 0
        %1716 = vmatpush1.bf16.msra.mxu0 0
        %1717 = vmatprep.subr.bf16.mxu0 0
        %1718 = vmatpush1.bf16.msra.mxu0 0
        %1719 = vmatprep.subr.bf16.mxu0 0
        %1720 = vmatpush1.bf16.msra.mxu0 0
        %1721 = vmatprep.subr.bf16.mxu0 0
        %1722 = vmatpush1.bf16.msra.mxu0 0
        %1723 = vmatprep.subr.bf16.mxu0 0
        %1724 = vmatpush1.bf16.msra.mxu0 0
        %1725 = vmatprep.subr.bf16.mxu0 0
        %1726 = vmatpush1.bf16.msra.mxu0 0
        %1727 = vmatprep.subr.bf16.mxu0 0
        %1728 = vmatpush1.bf16.msra.mxu0 0
        %1729 = vmatprep.subr.bf16.mxu0 0
        %1730 = vmatpush1.bf16.msra.mxu0 0
        %1731 = vmatprep.subr.bf16.mxu0 0
        %1732 = vmatpush1.bf16.msra.mxu0 0
        %1733 = vmatprep.subr.bf16.mxu0 0
        %1734 = vmatpush1.bf16.msra.mxu0 0
        %1735 = vmatprep.mubr.bf16.mxu0 0
        %1736 = vmatmul.mubr.bf16.gmra.mrb[0].mxu0 %v1695
        %v1737 = vpop.f32.mrb[0].mxu0
        %v1738 = vadd.f32 0.0, %v1737
        %v1739 = vpop.f32.mrb[0].mxu0
        %v1740 = vadd.f32 0.0, %v1739
        %v1741 = vpop.f32.mrb[0].mxu0
        %v1742 = vadd.f32 0.0, %v1741
        %v1743 = vpop.f32.mrb[0].mxu0
        %v1744 = vadd.f32 0.0, %v1743
        %1745 = vmatprep.mubr.bf16.mxu0 0
        %1746 = vmatmul.mubr.bf16.gmra.mrb[0].mxu0 %v1698
        %v1747 = vpop.f32.mrb[0].mxu0
        %v1748 = vadd.f32 0.0, %v1747
        %v1749 = vpop.f32.mrb[0].mxu0
        %v1750 = vadd.f32 0.0, %v1749
        %v1751 = vpop.f32.mrb[0].mxu0
        %v1752 = vadd.f32 0.0, %v1751
        %v1753 = vpop.f32.mrb[0].mxu0
        %v1754 = vadd.f32 0.0, %v1753
        %1755 = vmatprep.mubr.bf16.mxu0 0
        %1756 = vmatmul.mubr.bf16.gmra.mrb[0].mxu0 %v1701
        %v1757 = vpop.f32.mrb[0].mxu0
        %v1758 = vadd.f32 0.0, %v1757
        %v1759 = vpop.f32.mrb[0].mxu0
        %v1760 = vadd.f32 0.0, %v1759
        %v1761 = vpop.f32.mrb[0].mxu0
        %v1762 = vadd.f32 0.0, %v1761
        %v1763 = vpop.f32.mrb[0].mxu0
        %v1764 = vadd.f32 0.0, %v1763
        %1765 = vdwg.mxu0
        %v1766 = vadd.f32 %v1556, %v1738
        %v1767 = vadd.f32 %v1557, %v1740
        %v1768 = vadd.f32 %v1558, %v1742
        %v1769 = vadd.f32 %v1559, %v1744
        %v1770 = vadd.f32 %v1560, %v1748
        %v1771 = vadd.f32 %v1561, %v1750
        %v1772 = vadd.f32 %v1562, %v1752
        %v1773 = vadd.f32 %v1563, %v1754
        %v1774 = vadd.f32 %v1564, %v1758
        %v1775 = vadd.f32 %v1565, %v1760
        %v1776 = vadd.f32 %v1566, %v1762
        %v1777 = vadd.f32 %v1567, %v1764
        %s1778 = scalar_lea.vmem [#allocation7], 168
        %v1779 = vld [vmem:[%s1778] sm:$0xf]
        %v1780 = vld [vmem:[%s1778 + $0x4] sm:$0xf]
        %v1781 = vld [vmem:[%s1778 + $0x8] sm:$0xf]
        %v1782 = vld [vmem:[%s1778 + $0xc] sm:$0xf]
        %v1783 = vld [vmem:[%s1778 + $0x10] sm:$0xf]
        %v1784 = vld [vmem:[%s1778 + $0x14] sm:$0xf]
        %v1791 = vunpack.c.l.b16 %v1779
        %v1792 = vunpack.c.l.b16 %v1780
        %v1793 = vunpack.c.l.b16 %v1781
        %v1794 = vunpack.c.l.b16 %v1782
        %v1795 = vunpack.c.l.b16 %v1783
        %v1796 = vunpack.c.l.b16 %v1784
        %v1797 = vpack.c.b16 %v1792, %v1791
        %v1798 = vpack.c.b16 %v1794, %v1793
        %v1799 = vpack.c.b16 %v1796, %v1795
        %1818 = vrot.lane.b32.xlu0 %v1340, 112
        %v1819 = vpop.permute.xlu0 %1818
        %1820 = vrot.lane.b32.xlu0 %v1341, 112
        %v1821 = vpop.permute.xlu0 %1820
        %1822 = vrot.lane.b32.xlu0 %v1342, 112
        %v1823 = vpop.permute.xlu0 %1822
        %1824 = vrot.lane.b32.xlu0 %v1343, 112
        %v1825 = vpop.permute.xlu0 %1824
        %1826 = vrot.lane.b32.xlu0 %v1344, 112
        %v1827 = vpop.permute.xlu0 %1826
        %1828 = vrot.lane.b32.xlu0 %v1345, 112
        %v1829 = vpop.permute.xlu0 %1828
        %1830 = vrot.lane.b32.xlu0 %v1346, 112
        %v1831 = vpop.permute.xlu0 %1830
        %1832 = vrot.lane.b32.xlu0 %v1347, 112
        %v1833 = vpop.permute.xlu0 %1832
        %1834 = vrot.lane.b32.xlu0 %v1348, 112
        %v1835 = vpop.permute.xlu0 %1834
        %1836 = vrot.lane.b32.xlu0 %v1349, 112
        %v1837 = vpop.permute.xlu0 %1836
        %1838 = vrot.lane.b32.xlu0 %v1350, 112
        %v1839 = vpop.permute.xlu0 %1838
        %1840 = vrot.lane.b32.xlu0 %v1351, 112
        %v1841 = vpop.permute.xlu0 %1840
        %1842 = vrot.lane.b32.xlu0 %v1352, 112
        %v1843 = vpop.permute.xlu0 %1842
        %1844 = vrot.lane.b32.xlu0 %v1353, 112
        %v1845 = vpop.permute.xlu0 %1844
        %1846 = vrot.lane.b32.xlu0 %v1354, 112
        %v1847 = vpop.permute.xlu0 %1846
        %1848 = vrot.lane.b32.xlu0 %v1355, 112
        %v1849 = vpop.permute.xlu0 %1848
        %1850 = vrot.lane.b32.xlu0 %v1356, 112
        %v1851 = vpop.permute.xlu0 %1850
        %1852 = vrot.lane.b32.xlu0 %v1357, 112
        %v1853 = vpop.permute.xlu0 %1852
        %vm1854 = vcmask 916480
        %v1855 = vsel %vm1854, %v1819, %v1821
        %v1856 = vsel %vm1854, %v1821, %v1823
        %v1857 = vsel %vm1854, %v1825, %v1827
        %v1858 = vsel %vm1854, %v1827, %v1829
        %v1859 = vsel %vm1854, %v1831, %v1833
        %v1860 = vsel %vm1854, %v1833, %v1835
        %v1861 = vsel %vm1854, %v1837, %v1839
        %v1862 = vsel %vm1854, %v1839, %v1841
        %v1863 = vsel %vm1854, %v1843, %v1845
        %v1864 = vsel %vm1854, %v1845, %v1847
        %v1865 = vsel %vm1854, %v1849, %v1851
        %v1866 = vsel %vm1854, %v1851, %v1853
        %v1880 = vsel %vm557, %v1797, 0
        %v1883 = vsel %vm557, %v1798, 0
        %v1886 = vsel %vm557, %v1799, 0
        %1888 = vmatprep.subr.bf16.mxu0 %v1856
        %1889 = vmatpush1.bf16.msra.mxu0 %v1855
        %1890 = vmatprep.subr.bf16.mxu0 %v1858
        %1891 = vmatpush1.bf16.msra.mxu0 %v1857
        %1892 = vmatprep.subr.bf16.mxu0 %v1860
        %1893 = vmatpush1.bf16.msra.mxu0 %v1859
        %1894 = vmatprep.subr.bf16.mxu0 %v1862
        %1895 = vmatpush1.bf16.msra.mxu0 %v1861
        %1896 = vmatprep.subr.bf16.mxu0 %v1864
        %1897 = vmatpush1.bf16.msra.mxu0 %v1863
        %1898 = vmatprep.subr.bf16.mxu0 %v1866
        %1899 = vmatpush1.bf16.msra.mxu0 %v1865
        %1900 = vmatprep.subr.bf16.mxu0 0
        %1901 = vmatpush1.bf16.msra.mxu0 0
        %1902 = vmatprep.subr.bf16.mxu0 0
        %1903 = vmatpush1.bf16.msra.mxu0 0
        %1904 = vmatprep.subr.bf16.mxu0 0
        %1905 = vmatpush1.bf16.msra.mxu0 0
        %1906 = vmatprep.subr.bf16.mxu0 0
        %1907 = vmatpush1.bf16.msra.mxu0 0
        %1908 = vmatprep.subr.bf16.mxu0 0
        %1909 = vmatpush1.bf16.msra.mxu0 0
        %1910 = vmatprep.subr.bf16.mxu0 0
        %1911 = vmatpush1.bf16.msra.mxu0 0
        %1912 = vmatprep.subr.bf16.mxu0 0
        %1913 = vmatpush1.bf16.msra.mxu0 0
        %1914 = vmatprep.subr.bf16.mxu0 0
        %1915 = vmatpush1.bf16.msra.mxu0 0
        %1916 = vmatprep.subr.bf16.mxu0 0
        %1917 = vmatpush1.bf16.msra.mxu0 0
        %1918 = vmatprep.subr.bf16.mxu0 0
        %1919 = vmatpush1.bf16.msra.mxu0 0
        %1920 = vmatprep.mubr.bf16.mxu0 0
        %1921 = vmatmul.mubr.bf16.gmra.mrb[0].mxu0 %v1880
        %v1922 = vpop.f32.mrb[0].mxu0
        %v1923 = vadd.f32 0.0, %v1922
        %v1924 = vpop.f32.mrb[0].mxu0
        %v1925 = vadd.f32 0.0, %v1924
        %v1926 = vpop.f32.mrb[0].mxu0
        %v1927 = vadd.f32 0.0, %v1926
        %v1928 = vpop.f32.mrb[0].mxu0
        %v1929 = vadd.f32 0.0, %v1928
        %1930 = vmatprep.mubr.bf16.mxu0 0
        %1931 = vmatmul.mubr.bf16.gmra.mrb[0].mxu0 %v1883
        %v1932 = vpop.f32.mrb[0].mxu0
        %v1933 = vadd.f32 0.0, %v1932
        %v1934 = vpop.f32.mrb[0].mxu0
        %v1935 = vadd.f32 0.0, %v1934
        %v1936 = vpop.f32.mrb[0].mxu0
        %v1937 = vadd.f32 0.0, %v1936
        %v1938 = vpop.f32.mrb[0].mxu0
        %v1939 = vadd.f32 0.0, %v1938
        %1940 = vmatprep.mubr.bf16.mxu0 0
        %1941 = vmatmul.mubr.bf16.gmra.mrb[0].mxu0 %v1886
        %v1942 = vpop.f32.mrb[0].mxu0
        %v1943 = vadd.f32 0.0, %v1942
        %v1944 = vpop.f32.mrb[0].mxu0
        %v1945 = vadd.f32 0.0, %v1944
        %v1946 = vpop.f32.mrb[0].mxu0
        %v1947 = vadd.f32 0.0, %v1946
        %v1948 = vpop.f32.mrb[0].mxu0
        %v1949 = vadd.f32 0.0, %v1948
        %1950 = vdwg.mxu0
        %v1951 = vadd.f32 %v1766, %v1923
        %v1952 = vadd.f32 %v1767, %v1925
        %v1953 = vadd.f32 %v1768, %v1927
        %v1954 = vadd.f32 %v1769, %v1929
        %v1955 = vadd.f32 %v1770, %v1933
        %v1956 = vadd.f32 %v1771, %v1935
        %v1957 = vadd.f32 %v1772, %v1937
        %v1958 = vadd.f32 %v1773, %v1939
        %v1959 = vadd.f32 %v1774, %v1943
        %v1960 = vadd.f32 %v1775, %v1945
        %v1961 = vadd.f32 %v1776, %v1947
        %v1962 = vadd.f32 %v1777, %v1949
        %1963 = vrot.lane.b32.xlu0 %v805, 17
        %v1964 = vpop.permute.xlu0 %1963
        %1965 = vrot.lane.b32.xlu0 %v809, 17
        %v1966 = vpop.permute.xlu0 %1965
        %v1967 = vsel %vm699, %v1964, %v1966
        %vm1968 = vcmp.ne.s16.totalorder %v1964, 0
        %vm1969 = vcmp.ne.s16.totalorder %v1967, 0
        %vm1970 = vcmp.ne.s16.totalorder %v1966, 0
        %v1971 = vsel %vm1968, %v1340, 0
        %v1972 = vsel %vm1969, %v1341, 0
        %v1973 = vsel %vm1970, %v1342, 0
        %v1974 = vsel %vm1968, %v1343, 0
        %v1975 = vsel %vm1969, %v1344, 0
        %v1976 = vsel %vm1970, %v1345, 0
        %v1977 = vsel %vm1968, %v1346, 0
        %v1978 = vsel %vm1969, %v1347, 0
        %v1979 = vsel %vm1970, %v1348, 0
        %v1980 = vsel %vm1968, %v1349, 0
        %v1981 = vsel %vm1969, %v1350, 0
        %v1982 = vsel %vm1970, %v1351, 0
        %v1983 = vsel %vm1968, %v1352, 0
        %v1984 = vsel %vm1969, %v1353, 0
        %v1985 = vsel %vm1970, %v1354, 0
        %v1986 = vsel %vm1968, %v1355, 0
        %v1987 = vsel %vm1969, %v1356, 0
        %v1988 = vsel %vm1970, %v1357, 0
        %s1989 = scalar_lea.vmem [#allocation7], 192
        %v1990 = vld [vmem:[%s1989] sm:$0xf]
        %v1991 = vld [vmem:[%s1989 + $0x4] sm:$0xf]
        %v1992 = vld [vmem:[%s1989 + $0x8] sm:$0xf]
        %v1993 = vld [vmem:[%s1989 + $0xc] sm:$0xf]
        %v1994 = vld [vmem:[%s1989 + $0x10] sm:$0xf]
        %v1995 = vld [vmem:[%s1989 + $0x14] sm:$0xf]
        %v2002 = vunpack.c.l.b16 %v1990
        %v2003 = vunpack.c.l.b16 %v1991
        %v2004 = vunpack.c.l.b16 %v1992
        %v2005 = vunpack.c.l.b16 %v1993
        %v2006 = vunpack.c.l.b16 %v1994
        %v2007 = vunpack.c.l.b16 %v1995
        %v2008 = vpack.c.b16 %v2003, %v2002
        %v2009 = vpack.c.b16 %v2005, %v2004
        %v2010 = vpack.c.b16 %v2007, %v2006
        %2029 = vrot.lane.b32.xlu0 %v1971, 111
        %v2030 = vpop.permute.xlu0 %2029
        %2031 = vrot.lane.b32.xlu0 %v1972, 111
        %v2032 = vpop.permute.xlu0 %2031
        %2033 = vrot.lane.b32.xlu0 %v1973, 111
        %v2034 = vpop.permute.xlu0 %2033
        %2035 = vrot.lane.b32.xlu0 %v1974, 111
        %v2036 = vpop.permute.xlu0 %2035
        %2037 = vrot.lane.b32.xlu0 %v1975, 111
        %v2038 = vpop.permute.xlu0 %2037
        %2039 = vrot.lane.b32.xlu0 %v1976, 111
        %v2040 = vpop.permute.xlu0 %2039
        %2041 = vrot.lane.b32.xlu0 %v1977, 111
        %v2042 = vpop.permute.xlu0 %2041
        %2043 = vrot.lane.b32.xlu0 %v1978, 111
        %v2044 = vpop.permute.xlu0 %2043
        %2045 = vrot.lane.b32.xlu0 %v1979, 111
        %v2046 = vpop.permute.xlu0 %2045
        %2047 = vrot.lane.b32.xlu0 %v1980, 111
        %v2048 = vpop.permute.xlu0 %2047
        %2049 = vrot.lane.b32.xlu0 %v1981, 111
        %v2050 = vpop.permute.xlu0 %2049
        %2051 = vrot.lane.b32.xlu0 %v1982, 111
        %v2052 = vpop.permute.xlu0 %2051
        %2053 = vrot.lane.b32.xlu0 %v1983, 111
        %v2054 = vpop.permute.xlu0 %2053
        %2055 = vrot.lane.b32.xlu0 %v1984, 111
        %v2056 = vpop.permute.xlu0 %2055
        %2057 = vrot.lane.b32.xlu0 %v1985, 111
        %v2058 = vpop.permute.xlu0 %2057
        %2059 = vrot.lane.b32.xlu0 %v1986, 111
        %v2060 = vpop.permute.xlu0 %2059
        %2061 = vrot.lane.b32.xlu0 %v1987, 111
        %v2062 = vpop.permute.xlu0 %2061
        %2063 = vrot.lane.b32.xlu0 %v1988, 111
        %v2064 = vpop.permute.xlu0 %2063
        %v2065 = vsel %vm427, %v2030, %v2032
        %v2066 = vsel %vm427, %v2032, %v2034
        %v2067 = vsel %vm427, %v2036, %v2038
        %v2068 = vsel %vm427, %v2038, %v2040
        %v2069 = vsel %vm427, %v2042, %v2044
        %v2070 = vsel %vm427, %v2044, %v2046
        %v2071 = vsel %vm427, %v2048, %v2050
        %v2072 = vsel %vm427, %v2050, %v2052
        %v2073 = vsel %vm427, %v2054, %v2056
        %v2074 = vsel %vm427, %v2056, %v2058
        %v2075 = vsel %vm427, %v2060, %v2062
        %v2076 = vsel %vm427, %v2062, %v2064
        %v2090 = vsel %vm557, %v2008, 0
        %v2093 = vsel %vm557, %v2009, 0
        %v2096 = vsel %vm557, %v2010, 0
        %2098 = vmatprep.subr.bf16.mxu0 %v2066
        %2099 = vmatpush1.bf16.msra.mxu0 %v2065
        %2100 = vmatprep.subr.bf16.mxu0 %v2068
        %2101 = vmatpush1.bf16.msra.mxu0 %v2067
        %2102 = vmatprep.subr.bf16.mxu0 %v2070
        %2103 = vmatpush1.bf16.msra.mxu0 %v2069
        %2104 = vmatprep.subr.bf16.mxu0 %v2072
        %2105 = vmatpush1.bf16.msra.mxu0 %v2071
        %2106 = vmatprep.subr.bf16.mxu0 %v2074
        %2107 = vmatpush1.bf16.msra.mxu0 %v2073
        %2108 = vmatprep.subr.bf16.mxu0 %v2076
        %2109 = vmatpush1.bf16.msra.mxu0 %v2075
        %2110 = vmatprep.subr.bf16.mxu0 0
        %2111 = vmatpush1.bf16.msra.mxu0 0
        %2112 = vmatprep.subr.bf16.mxu0 0
        %2113 = vmatpush1.bf16.msra.mxu0 0
        %2114 = vmatprep.subr.bf16.mxu0 0
        %2115 = vmatpush1.bf16.msra.mxu0 0
        %2116 = vmatprep.subr.bf16.mxu0 0
        %2117 = vmatpush1.bf16.msra.mxu0 0
        %2118 = vmatprep.subr.bf16.mxu0 0
        %2119 = vmatpush1.bf16.msra.mxu0 0
        %2120 = vmatprep.subr.bf16.mxu0 0
        %2121 = vmatpush1.bf16.msra.mxu0 0
        %2122 = vmatprep.subr.bf16.mxu0 0
        %2123 = vmatpush1.bf16.msra.mxu0 0
        %2124 = vmatprep.subr.bf16.mxu0 0
        %2125 = vmatpush1.bf16.msra.mxu0 0
        %2126 = vmatprep.subr.bf16.mxu0 0
        %2127 = vmatpush1.bf16.msra.mxu0 0
        %2128 = vmatprep.subr.bf16.mxu0 0
        %2129 = vmatpush1.bf16.msra.mxu0 0
        %2130 = vmatprep.mubr.bf16.mxu0 0
        %2131 = vmatmul.mubr.bf16.gmra.mrb[0].mxu0 %v2090
        %v2132 = vpop.f32.mrb[0].mxu0
        %v2133 = vadd.f32 0.0, %v2132
        %v2134 = vpop.f32.mrb[0].mxu0
        %v2135 = vadd.f32 0.0, %v2134
        %v2136 = vpop.f32.mrb[0].mxu0
        %v2137 = vadd.f32 0.0, %v2136
        %v2138 = vpop.f32.mrb[0].mxu0
        %v2139 = vadd.f32 0.0, %v2138
        %2140 = vmatprep.mubr.bf16.mxu0 0
        %2141 = vmatmul.mubr.bf16.gmra.mrb[0].mxu0 %v2093
        %v2142 = vpop.f32.mrb[0].mxu0
        %v2143 = vadd.f32 0.0, %v2142
        %v2144 = vpop.f32.mrb[0].mxu0
        %v2145 = vadd.f32 0.0, %v2144
        %v2146 = vpop.f32.mrb[0].mxu0
        %v2147 = vadd.f32 0.0, %v2146
        %v2148 = vpop.f32.mrb[0].mxu0
        %v2149 = vadd.f32 0.0, %v2148
        %2150 = vmatprep.mubr.bf16.mxu0 0
        %2151 = vmatmul.mubr.bf16.gmra.mrb[0].mxu0 %v2096
        %v2152 = vpop.f32.mrb[0].mxu0
        %v2153 = vadd.f32 0.0, %v2152
        %v2154 = vpop.f32.mrb[0].mxu0
        %v2155 = vadd.f32 0.0, %v2154
        %v2156 = vpop.f32.mrb[0].mxu0
        %v2157 = vadd.f32 0.0, %v2156
        %v2158 = vpop.f32.mrb[0].mxu0
        %v2159 = vadd.f32 0.0, %v2158
        %2160 = vdwg.mxu0
        %v2161 = vadd.f32 %v1951, %v2133
        %v2162 = vadd.f32 %v1952, %v2135
        %v2163 = vadd.f32 %v1953, %v2137
        %v2164 = vadd.f32 %v1954, %v2139
        %v2165 = vadd.f32 %v1955, %v2143
        %v2166 = vadd.f32 %v1956, %v2145
        %v2167 = vadd.f32 %v1957, %v2147
        %v2168 = vadd.f32 %v1958, %v2149
        %v2169 = vadd.f32 %v1959, %v2153
        %v2170 = vadd.f32 %v1960, %v2155
        %v2171 = vadd.f32 %v1961, %v2157
        %v2172 = vadd.f32 %v1962, %v2159
        %v2173 = vld [vmem:[%s2] sm:$0xff]
        %v2174 = vld [vmem:[%s2 + $0x8] sm:$0xff]
        %v2175 = vld [vmem:[%s2 + $0x10] sm:$0xff]
        %v2176 = vld [vmem:[%s2 + $0x18] sm:$0xff]
        %v2177 = vld [vmem:[%s2 + $0x20] sm:$0xff]
        %v2178 = vld [vmem:[%s2 + $0x28] sm:$0xff]
        %2180 = vset.pattern.permute.xlu0 0
        %2181 = vperm.xlu0 %2180, %v2173
        %v2182 = vpop.permute.xlu0 %2181
        %2185 = vset.pattern.permute.xlu0 0
        %2186 = vperm.xlu0 %2185, %v2174
        %v2187 = vpop.permute.xlu0 %2186
        %2190 = vset.pattern.permute.xlu0 0
        %2191 = vperm.xlu0 %2190, %v2175
        %v2192 = vpop.permute.xlu0 %2191
        %2195 = vset.pattern.permute.xlu0 0
        %2196 = vperm.xlu0 %2195, %v2176
        %v2197 = vpop.permute.xlu0 %2196
        %2200 = vset.pattern.permute.xlu0 0
        %2201 = vperm.xlu0 %2200, %v2177
        %v2202 = vpop.permute.xlu0 %2201
        %2205 = vset.pattern.permute.xlu0 0
        %2206 = vperm.xlu0 %2205, %v2178
        %v2207 = vpop.permute.xlu0 %2206
        %v2209 = vmul.f32 %v2161, %v2182
        %v2210 = vmul.f32 %v2162, %v2182
        %v2211 = vmul.f32 %v2163, %v2187
        %v2212 = vmul.f32 %v2164, %v2187
        %v2213 = vmul.f32 %v2165, %v2192
        %v2214 = vmul.f32 %v2166, %v2192
        %v2215 = vmul.f32 %v2167, %v2197
        %v2216 = vmul.f32 %v2168, %v2197
        %v2217 = vmul.f32 %v2169, %v2202
        %v2218 = vmul.f32 %v2170, %v2202
        %v2219 = vmul.f32 %v2171, %v2207
        %v2220 = vmul.f32 %v2172, %v2207
        %2221 = vset.pattern.permute.xlu0 1
        %2222 = vperm.xlu0 %2221, %v2173
        %v2223 = vpop.permute.xlu0 %2222
        %2225 = vset.pattern.permute.xlu0 1
        %2226 = vperm.xlu0 %2225, %v2174
        %v2227 = vpop.permute.xlu0 %2226
        %2229 = vset.pattern.permute.xlu0 1
        %2230 = vperm.xlu0 %2229, %v2175
        %v2231 = vpop.permute.xlu0 %2230
        %2233 = vset.pattern.permute.xlu0 1
        %2234 = vperm.xlu0 %2233, %v2176
        %v2235 = vpop.permute.xlu0 %2234
        %2237 = vset.pattern.permute.xlu0 1
        %2238 = vperm.xlu0 %2237, %v2177
        %v2239 = vpop.permute.xlu0 %2238
        %2241 = vset.pattern.permute.xlu0 1
        %2242 = vperm.xlu0 %2241, %v2178
        %v2243 = vpop.permute.xlu0 %2242
        %v2245 = vadd.f32 %v2209, %v2223
        %v2246 = vadd.f32 %v2210, %v2223
        %v2247 = vadd.f32 %v2211, %v2227
        %v2248 = vadd.f32 %v2212, %v2227
        %v2249 = vadd.f32 %v2213, %v2231
        %v2250 = vadd.f32 %v2214, %v2231
        %v2251 = vadd.f32 %v2215, %v2235
        %v2252 = vadd.f32 %v2216, %v2235
        %v2253 = vadd.f32 %v2217, %v2239
        %v2254 = vadd.f32 %v2218, %v2239
        %v2255 = vadd.f32 %v2219, %v2243
        %v2256 = vadd.f32 %v2220, %v2243
        %v2257 = vmax.f32 %v2245, 0.0
        %v2258 = vmax.f32 %v2246, 0.0
        %v2259 = vmax.f32 %v2247, 0.0
        %v2260 = vmax.f32 %v2248, 0.0
        %v2261 = vmax.f32 %v2249, 0.0
        %v2262 = vmax.f32 %v2250, 0.0
        %v2263 = vmax.f32 %v2251, 0.0
        %v2264 = vmax.f32 %v2252, 0.0
        %v2265 = vmax.f32 %v2253, 0.0
        %v2266 = vmax.f32 %v2254, 0.0
        %v2267 = vmax.f32 %v2255, 0.0
        %v2268 = vmax.f32 %v2256, 0.0
        %v2269 = vld [vmem:[%s3] sm:$0x1]
        %s2270 = sld [smem:[#allocation3]]
        %v2271 = vstv %s2270
        %vm2272 = vcmask 392192
        %v2274 = vsel %vm2272, %v2269, 0
        %2276 = vmatprep.subr.mxu0 %v2258
        %2277 = vmatpush1.msra.mxu0 %v2257
        %2278 = vmatprep.subr.mxu0 %v2260
        %2279 = vmatpush1.msra.mxu0 %v2259
        %2280 = vmatprep.subr.mxu0 %v2262
        %2281 = vmatpush1.msra.mxu0 %v2261
        %2282 = vmatprep.subr.mxu0 %v2264
        %2283 = vmatpush1.msra.mxu0 %v2263
        %2284 = vmatprep.subr.mxu0 %v2266
        %2285 = vmatpush1.msra.mxu0 %v2265
        %2286 = vmatprep.subr.mxu0 %v2268
        %2287 = vmatpush1.msra.mxu0 %v2267
        %2288 = vmatprep.subr.mxu0 0.0
        %2289 = vmatpush1.msra.mxu0 0.0
        %2290 = vmatprep.subr.mxu0 0.0
        %2291 = vmatpush1.msra.mxu0 0.0
        %2292 = vmatprep.subr.mxu0 0.0
        %2293 = vmatpush1.msra.mxu0 0.0
        %2294 = vmatprep.subr.mxu0 0.0
        %2295 = vmatpush1.msra.mxu0 0.0
        %2296 = vmatprep.subr.mxu0 0.0
        %2297 = vmatpush1.msra.mxu0 0.0
        %2298 = vmatprep.subr.mxu0 0.0
        %2299 = vmatpush1.msra.mxu0 0.0
        %2300 = vmatprep.subr.mxu0 0.0
        %2301 = vmatpush1.msra.mxu0 0.0
        %2302 = vmatprep.subr.mxu0 0.0
        %2303 = vmatpush1.msra.mxu0 0.0
        %2304 = vmatprep.subr.mxu0 0.0
        %2305 = vmatpush1.msra.mxu0 0.0
        %2306 = vmatprep.subr.mxu0 0.0
        %2307 = vmatpush1.msra.mxu0 0.0
        %2308 = vmatprep.subr.mxu0 0.0
        %2309 = vmatpush1.msra.mxu0 0.0
        %2310 = vmatprep.subr.mxu0 0.0
        %2311 = vmatpush1.msra.mxu0 0.0
        %2312 = vmatprep.subr.mxu0 0.0
        %2313 = vmatpush1.msra.mxu0 0.0
        %2314 = vmatprep.subr.mxu0 0.0
        %2315 = vmatpush1.msra.mxu0 0.0
        %2316 = vmatprep.subr.mxu0 0.0
        %2317 = vmatpush1.msra.mxu0 0.0
        %2318 = vmatprep.subr.mxu0 0.0
        %2319 = vmatpush1.msra.mxu0 0.0
        %2320 = vmatprep.subr.mxu0 0.0
        %2321 = vmatpush1.msra.mxu0 0.0
        %2322 = vmatprep.subr.mxu0 0.0
        %2323 = vmatpush1.msra.mxu0 0.0
        %2324 = vmatprep.subr.mxu0 0.0
        %2325 = vmatpush1.msra.mxu0 0.0
        %2326 = vmatprep.subr.mxu0 0.0
        %2327 = vmatpush1.msra.mxu0 0.0
        %2328 = vmatprep.subr.mxu0 0.0
        %2329 = vmatpush1.msra.mxu0 0.0
        %2330 = vmatprep.subr.mxu0 0.0
        %2331 = vmatpush1.msra.mxu0 0.0
        %2332 = vmatprep.subr.mxu0 0.0
        %2333 = vmatpush1.msra.mxu0 0.0
        %2334 = vmatprep.subr.mxu0 0.0
        %2335 = vmatpush1.msra.mxu0 0.0
        %2336 = vmatprep.subr.mxu0 0.0
        %2337 = vmatpush1.msra.mxu0 0.0
        %2338 = vmatprep.subr.mxu0 0.0
        %2339 = vmatpush1.msra.mxu0 0.0
        %2340 = vmatprep.mubr.f32.mxu0 0.0
        %2341 = vmatmul.mubr.f32.gmra.mrb[0].mxu0 %v2274
        %v2342 = vpop.f32.mrb[0].mxu0
        %v2343 = vadd.f32 %v2271, %v2342
        %v2344 = vpop.f32.mrb[0].mxu0
        %v2345 = vadd.f32 %v2271, %v2344
        %2346 = vdwg.mxu0
        %v2349 = vcombine.low %v2343, %v2345
        %v2351 = vunpack.c.l.s4 1966171168
        %v2352 = vunpack.c.0.s8 %v2351
        %v2353 = vlaneseq
        %v2354 = vshrl.u32 %v2353, 7
        %v2355 = vsub.s32 %v2352, %v2354
        %v2356 = vrot.slane %v2349, %v2355
        %v2358 = vunpack.c.l.s4 1966171168
        %v2359 = vunpack.c.0.s8 %v2358
        %v2360 = vlaneseq
        %v2361 = vshrl.u32 %v2360, 7
        %v2362 = vsub.s32 %v2359, %v2361
        %v2363 = vrot.slane %v2356, %v2362
        %v2365 = vlaneseq
        %vm2366 = vcmp.ge.s32.totalorder %v2365, 0
        %vm2367 = vcmp.lt.s32.totalorder %v2365, 256
        %vm2368 = vmand %vm2366, %vm2367
        %2369 = vst.msk [vmem:[%s258] sm:$0x3] %vm2368, %v2363
        %s2370 = sand.u32 %s142, 1
        %s2371 = scalar_lea.sflag [#allocation6], %s2370
        %s2372 = sand.u32 %s142, 1
        %s2373 = smul.addr %s2372, 2
        %s2374 = scalar_lea.vmem [#allocation9], %s2373
        // Predicated region
        $region49: #{tpu_custom_call.1} parent=39 // pred_check
          %p2375 = pneg %p152
        $region50: #{tpu_custom_call.1} parent=39 // pred_check_branch
          %2377 = sbr.rel (%p2375) target = $region52
        $region51: #{tpu_custom_call.1} parent=39 // pred_region
          %s2379 = ssub.s32 32, 32
          %2380 = vsyncadd %s2371, %s2379
          %s2381 = smul.addr %s24, 2
          %s2382 = smul.addr %s2381, 16
          %s2383 = scalar_lea.hbm %s5, %s2382
          %s2385 = sshll.u32 %s2374, 4
          %s2386 = int_to_ptr.vmem [resolvable:$true] %s2385
          %2388 = dma.vmem_to_hbm [thread:$0]  %s2386, 32, %s2383, %s2371
        $region52: #{tpu_custom_call.1} parent=39 // pred_fallthru
          _
      $region40: #{tpu_custom_call.1} parent=5 // pred_fallthru
        _
      %p2389 = scmp.le.s32.totalorder 2, %s19
      // Predicated region
      $region53: #{tpu_custom_call.1} parent=5 // pred_check
        %p2390 = pneg %p2389
      $region54: #{tpu_custom_call.1} parent=5 // pred_check_branch
        %2392 = sbr.rel (%p2390) target = $region56
      $region55: #{tpu_custom_call.1} parent=5 // pred_region
        %s2393 = ssub.s32 %s19, 2
        // Predicated region
        $region57: #{tpu_custom_call.1} parent=55 // pred_check
          %p2394 = pneg %p158
        $region58: #{tpu_custom_call.1} parent=55 // pred_check_branch
          %2396 = sbr.rel (%p2394) target = $region60
        $region59: #{tpu_custom_call.1} parent=55 // pred_region
          %s2397 = sand.u32 %s143, 1
          %s2398 = scalar_lea.sflag [#allocation6], %s2397
          %s2399 = sand.u32 %s143, 1
          %s2400 = smul.addr %s2399, 2
          %s2401 = scalar_lea.vmem [#allocation9], %s2400
          %2402 = dma.done %s2398, 32
        $region60: #{tpu_custom_call.1} parent=55 // pred_fallthru
          _
      $region56: #{tpu_custom_call.1} parent=5 // pred_fallthru
        _
    $region6: #{tpu_custom_call.1} parent=1 // loop_footer
      %s23 = sadd.s32 1, %s19
    $region7: #{tpu_custom_call.1} parent=1 // loop_footer_branch
      %18 = sbr.rel target = $region3
    $region8: #{tpu_custom_call.1} parent=1 // loop_exit
      _
    %2403 = vsyncpa [#allocation5], 1
    %s2404 = scalar_lea.sflag [#allocation5], 1
    %2405 = vsyncpa %s2404, 1
    %2406 = vsyncpa [#allocation8], 1
    %2407 = vsyncpa [#allocation6], 1
    %s2408 = scalar_lea.sflag [#allocation6], 1
    %2409 = vsyncpa %s2408, 1

</llo_original>
